<compile_context>
chip_gen: v5e
topology: v5e:2x2
jax: 0.10.0
libtpu: 0.0.40
codegen_flags: <defaults>
</compile_context>

<pallas_src>
import functools
import math

import jax
import jax.numpy as jnp
import numpy as np
from jax.experimental import pallas as pl
from jax.experimental.pallas import tpu as pltpu

PI = math.pi
LANE = 128


def _round_up(x, m):
    return ((x + m - 1) // m) * m


def _cdiv(a, b):
    return -(-a // b)


# ----------------------------------------------------------------------------
# Pallas kernel: SphereSurfaceModel MLP + sphere projection + Fourier ILT
# ----------------------------------------------------------------------------
def _nl_ilt_kernel(xf_ref, pb1_ref, w1f_ref, w2_ref, b2_ref, w3_ref, b3_ref,
                   wri_ref, out_ref, *, dp, half, sc_col):
    # Layer 1: per-timestep features only; the per-batch latent contribution
    # (p @ W1_latent + b1) is precomputed in the wrapper and enters as the bias.
    h = jnp.dot(xf_ref[...], w1f_ref[...], preferred_element_type=jnp.float32)
    h = jnp.maximum(h + pb1_ref[...], 0.0)
    # Layer 2
    h = jnp.dot(h.astype(w2_ref.dtype), w2_ref[...],
                preferred_element_type=jnp.float32) + b2_ref[...]
    h = jnp.maximum(h, 0.0)
    # Layer 3: packed head, theta columns at [0, dp), phi columns at [half, half+dp).
    o = jnp.dot(h.astype(w3_ref.dtype), w3_ref[...],
                preferred_element_type=jnp.float32) + b3_ref[...]

    # Single tanh pass over the packed theta|phi group with a per-lane scale
    # (pi for theta lanes, pi/2 for phi lanes, 0 for padding lanes).
    lane = jax.lax.broadcasted_iota(jnp.int32, o.shape, 1)
    scale = jnp.where(lane < dp, PI,
                      jnp.where((lane >= half) & (lane < half + dp), PI / 2.0, 0.0))
    ang = jnp.tanh(o) * scale

    # Inverse stereographic projection (Riemann sphere -> complex F(s)); all f32.
    cos_t = jnp.cos(ang)                        # valid in theta lanes [0, dp)
    sin_t = jnp.sin(ang)
    r = jnp.tan(ang * 0.5 + PI / 4.0)           # valid in phi lanes [half, half+dp)
    # Align r (phi lanes) with cos/sin (theta lanes).  shift == half == width/2, so
    # the rotation direction is irrelevant.  Off-range lanes stay finite.
    r_al = pltpu.roll(r, shift=half, axis=1)

    # Fused Fourier-ILT reduction: one K = 2*o_wpad f32 MXU matmul.  Garbage lanes
    # (>= dp) multiply all-zero rows of wri and contribute exactly 0.
    f = jnp.concatenate([r_al * cos_t, r_al * sin_t], axis=-1)
    ilt = jnp.dot(f, wri_ref[...], preferred_element_type=jnp.float32)

    sc = xf_ref[:, sc_col:sc_col + 1].astype(jnp.float32)    # exp(gamma t)/T lane
    out_ref[...] = (sc * ilt).astype(out_ref.dtype)


# ----------------------------------------------------------------------------
# Parameter preparation: lane-dense padding, packed theta|phi head, fused ILT matrix
# ----------------------------------------------------------------------------
def prepare_nl_params(prm, *, terms, start_k, output_dim, ilt_scale=2.0,
                      matmul_dtype=jnp.bfloat16):
    w1, b1 = prm["w1"], prm["b1"]
    w2, b2 = prm["w2"], prm["b2"]
    w3, b3 = prm["w3"], prm["b3"]
    dim_in, hidden = w1.shape
    dp = output_dim * terms                      # divide_point
    latent = dim_in - 2 * terms

    # NOTE: the 128-lane padding (hidden 64 -> 128, etc.) is load-bearing: it keeps
    # every load/store unmasked and every matmul shape MXU-legal.  The extra MACs are
    # not the bottleneck (the kernel is HBM/EUP bound) -- do not shrink below 128.
    feat_pad = _round_up(2 * terms + 1, LANE)    # +1 lane carries exp(gamma t)/T
    hidden_pad = _round_up(hidden, LANE)
    o_wpad = _round_up(2 * dp, LANE)             # packed theta|phi head width
    half = o_wpad // 2
    out_pad = _round_up(output_dim, LANE)

    w1f = jnp.zeros((feat_pad, hidden_pad), jnp.float32).at[:2 * terms, :hidden].set(
        w1[:2 * terms])                          # sc lane row stays zero
    w2p = jnp.zeros((hidden_pad, hidden_pad), jnp.float32).at[:hidden, :hidden].set(w2)
    b2p = jnp.zeros((1, hidden_pad), jnp.float32).at[:, :hidden].set(b2)
    # theta columns -> [0, dp), phi columns -> [half, half + dp)
    w3p = (jnp.zeros((hidden_pad, o_wpad), jnp.float32)
           .at[:hidden, :dp].set(w3[:, :dp])
           .at[:hidden, half:half + dp].set(w3[:, dp:]))
    b3p = (jnp.zeros((1, o_wpad), jnp.float32)
           .at[:, :dp].set(b3[:, :dp])
           .at[:, half:half + dp].set(b3[:, dp:]))

    # Row-constant Fourier ILT weights (t/T == 1/ilt_scale), stacked [real; imag]
    # into one matrix so the s-term reduction is a single fused MXU matmul.
    k = start_k + np.arange(terms)
    ang = np.pi * k / ilt_scale
    wgt = np.where(k == 0, 1.0, 2.0)             # standard series: 2x, halved at k==0
    c = (wgt * np.cos(ang)).astype(np.float32)
    s = (wgt * np.sin(ang)).astype(np.float32)
    wri = np.zeros((2 * o_wpad, out_pad), np.float32)
    for d in range(output_dim):
        wri[d * terms:(d + 1) * terms, d] = c
        wri[o_wpad + d * terms:o_wpad + (d + 1) * terms, d] = -s

    return dict(
        w1f=w1f.astype(matmul_dtype),
        w1p=jnp.asarray(w1[2 * terms:], jnp.float32),   # latent rows, used wrapper-side
        b1=jnp.asarray(b1, jnp.float32),
        w2=w2p.astype(matmul_dtype), b2=b2p,
        w3=w3p.astype(matmul_dtype), b3=b3p,
        wri=jnp.asarray(wri),
        terms=terms, start_k=start_k, output_dim=output_dim, latent=latent,
        feat_pad=feat_pad, hidden_pad=hidden_pad, o_wpad=o_wpad, half=half,
        out_pad=out_pad, ilt_scale=ilt_scale, matmul_dtype=matmul_dtype,
    )


# ----------------------------------------------------------------------------
# laplace_reconstruct: wrapper around the Pallas kernel
# ----------------------------------------------------------------------------
def laplace_reconstruct_pallas(blk, p, t, *, alpha=1e-3, tol=1e-6, time_tile=1024):
    """p: (B, latent), t: (1, Ttot) -> padded slab (B, Ttot_pad, out_pad) bf16.

    Callers slice [:, :Ttot, :output_dim]; the slice fuses into downstream
    elementwise consumers, so the padded slab is never copied on its own.
    """
    terms = blk["terms"]
    start_k = blk["start_k"]
    output_dim = blk["output_dim"]
    feat_pad, hidden_pad = blk["feat_pad"], blk["hidden_pad"]
    o_wpad, half, out_pad = blk["o_wpad"], blk["half"], blk["out_pad"]
    ilt_scale = blk["ilt_scale"]
    mm = blk["matmul_dtype"]

    B = p.shape[0]
    t_row = t.reshape(-1).astype(jnp.float32)             # (Ttot,) shared by all batches
    Ttot = t_row.shape[0]

    # Per-timestep (batch-independent) quantities: ILT contour, sphere coords of s_k,
    # and exp(gamma t)/T, packed into one lane-dense feature block.
    T = ilt_scale * t_row
    gamma = alpha - jnp.log(tol) / T
    k = jnp.asarray(start_k + np.arange(terms), jnp.float32)
    s_re = jnp.broadcast_to(gamma[:, None], (Ttot, terms))
    s_im = PI * k[None, :] / T[:, None]
    s_abs = jnp.sqrt(s_re * s_re + s_im * s_im)
    theta_in = jnp.arctan2(s_im, s_re)
    phi_in = 2.0 * jnp.arctan(s_abs) - PI / 2.0
    sc = (jnp.exp(gamma * t_row) / T)[:, None]
    feat = jnp.concatenate([theta_in, phi_in, sc], axis=-1)  # (Ttot, 2*terms+1)

    # Balanced time tiles; >= 2 tiles along the outer (parallel) axis when the series
    # is long enough (v7x megacore), otherwise one big tile (v5e/v6e single TC).
    n_target = max(1, _cdiv(Ttot, time_tile))
    if _round_up(Ttot, 16) >= 32:
        n_target = max(n_target, 2)
    tt = _round_up(_cdiv(Ttot, n_target), 16)
    nt = _cdiv(Ttot, tt)
    Ttot_pad = nt * tt

    feat = jnp.pad(feat, ((0, Ttot_pad - Ttot), (0, feat_pad - (2 * terms + 1))))
    feat = feat.astype(mm)

    # Per-batch latent contribution folded into the layer-1 bias (wrapper-side f32,
    # computed once per call instead of an M=1 matmul on every grid step).
    pb1 = p.astype(jnp.float32) @ blk["w1p"] + blk["b1"]      # (B, hidden)
    pb1 = jnp.pad(pb1, ((0, 0), (0, hidden_pad - pb1.shape[-1])))[:, None, :]

    kern = functools.partial(_nl_ilt_kernel, dp=output_dim * terms, half=half,
                             sc_col=2 * terms)
    rows = lambda ti, b: (ti, 0)      # batch-independent: block index constant over b
    const = lambda ti, b: (0, 0)

    out = pl.pallas_call(
        kern,
        out_shape=jax.ShapeDtypeStruct((B, Ttot_pad, out_pad), jnp.bfloat16),
        grid=(nt, B),                 # time tiles outer, batch inner
        in_specs=[
            pl.BlockSpec((tt, feat_pad), rows),                         # s_k feats + sc
            pl.BlockSpec((None, 1, hidden_pad), lambda ti, b: (b, 0, 0)),  # p@W1p + b1
            pl.BlockSpec((feat_pad, hidden_pad), const),                # W1 feature rows
            pl.BlockSpec((hidden_pad, hidden_pad), const),              # W2
            pl.BlockSpec((1, hidden_pad), const),                       # b2
            pl.BlockSpec((hidden_pad, o_wpad), const),                  # W3 (packed)
            pl.BlockSpec((1, o_wpad), const),                           # b3 (packed)
            pl.BlockSpec((2 * o_wpad, out_pad), const),                 # fused ILT matrix
        ],
        out_specs=pl.BlockSpec((None, tt, out_pad), lambda ti, b: (b, ti, 0)),
        compiler_params=pltpu.CompilerParams(
            dimension_semantics=("parallel", "parallel")),
    )(feat, pb1, blk["w1f"], blk["w2"], blk["b2"], blk["w3"], blk["b3"], blk["wri"])
    return out


# ----------------------------------------------------------------------------
# Pure-JAX f32 reference for the Laplace block (kernel validation)
# ----------------------------------------------------------------------------
def laplace_reconstruct_ref(prm, p, t, *, terms, start_k, output_dim,
                            ilt_scale=2.0, alpha=1e-3, tol=1e-6):
    w1, b1, w2, b2, w3, b3 = (prm["w1"], prm["b1"], prm["w2"], prm["b2"],
                              prm["w3"], prm["b3"])
    B = p.shape[0]
    t_row = t.reshape(-1).astype(jnp.float32)
    Ttot = t_row.shape[0]
    T = ilt_scale * t_row
    gamma = alpha - jnp.log(tol) / T
    k = start_k + jnp.arange(terms, dtype=jnp.float32)
    s_re = jnp.broadcast_to(gamma[:, None], (Ttot, terms))
    s_im = jnp.pi * k[None, :] / T[:, None]
    s_abs = jnp.sqrt(s_re * s_re + s_im * s_im)
    theta_in = jnp.arctan2(s_im, s_re)
    phi_in = 2.0 * jnp.arctan(s_abs) - jnp.pi / 2.0
    feat = jnp.concatenate([theta_in, phi_in], axis=-1)          # (Ttot, 2*terms)
    x = jnp.concatenate(
        [jnp.broadcast_to(feat[None], (B, Ttot, 2 * terms)),
         jnp.broadcast_to(p[:, None, :], (B, Ttot, p.shape[-1]))], axis=-1)
    h = jax.nn.relu(x @ w1 + b1)
    h = jax.nn.relu(h @ w2 + b2)
    o = h @ w3 + b3
    dp = output_dim * terms
    theta = jnp.tanh(o[..., :dp]) * jnp.pi
    phi = jnp.tanh(o[..., dp:]) * (jnp.pi / 2.0)
    r = jnp.tan(phi * 0.5 + jnp.pi / 4.0)
    f_re = (r * jnp.cos(theta)).reshape(B, Ttot, output_dim, terms)
    f_im = (r * jnp.sin(theta)).reshape(B, Ttot, output_dim, terms)
    ang = jnp.pi * k / ilt_scale
    wgt = jnp.where(k == 0, 1.0, 2.0)
    ilt = jnp.sum(wgt * (f_re * jnp.cos(ang) - f_im * jnp.sin(ang)), axis=-1)
    return (jnp.exp(gamma * t_row) / T)[None, :, None] * ilt


# ----------------------------------------------------------------------------
# Plain-JAX glue: encoder, avg_pool1d, hierarchical loop, parameter init
# ----------------------------------------------------------------------------
def encoder_apply(eprm, observed_data, available_forecasts):
    # TODO(synk): BiEncoder not in the provided source; plain-JAX MLP stand-in
    #             (ignores observed_tp).
    B = observed_data.shape[0]
    xo = observed_data.reshape(B, -1)
    xf = available_forecasts.reshape(B, -1)
    ho = jax.nn.relu(xo @ eprm["wo1"] + eprm["bo1"])
    hf = jax.nn.relu(xf @ eprm["wf1"] + eprm["bf1"])
    h = jnp.concatenate([ho, hf], axis=-1)
    return jnp.tanh(h @ eprm["w2"] + eprm["b2"])                  # (B, latent)


def avg_pool1d(tp, kern):
    # matches F.avg_pool1d(kernel=k, stride=k) on a (1, T) vector + the
    # transpose/squeeze/unsqueeze dance in the PyTorch forward
    T = tp.shape[-1]
    Tk = (T // kern) * kern
    return tp[..., :Tk].reshape(1, Tk // kern, kern).mean(axis=-1)  # (1, T//k)


def hierarchical_forward(params, observed_data, available_forecasts,
                         observed_tp, tp_to_predict, *,
                         s_recon_terms, start_ks, avg_terms_list,
                         output_dim, input_timesteps):
    prepped = [prepare_nl_params(params["nl"][j], terms=s_recon_terms[j],
                                 start_k=start_ks[j], output_dim=output_dim)
               for j in range(len(s_recon_terms))]
    all_fcsts = []
    for i in range(len(avg_terms_list)):
        avg_tp = avg_pool1d(tp_to_predict, avg_terms_list[i])     # (1, T')
        out = observed_data
        fcsts = 0.0
        for j in range(i + 1):
            p = encoder_apply(params["enc"][j], out, available_forecasts)
            all_tp = jnp.concatenate([observed_tp, avg_tp], axis=-1)
            Ttot = all_tp.shape[-1]
            temp = laplace_reconstruct_pallas(prepped[j], p, all_tp)  # padded slab
            # slice the padded slab directly at the consumer (fuses with the
            # elementwise subtract/accumulate; no standalone copy of the slab)
            fcst = temp[:, input_timesteps:Ttot, :output_dim].astype(jnp.float32)
            recon = temp[:, :input_timesteps, :output_dim].astype(jnp.float32)
            out = out - recon
            fcsts = fcsts + fcst
        all_fcsts.append(fcsts)
    return all_fcsts


def _linear(key, fan_in, fan_out):
    return (jax.random.normal(key, (fan_in, fan_out), jnp.float32)
            / jnp.sqrt(jnp.float32(fan_in)))


def init_params(key, *, input_dim, output_dim, latent_dim, hidden_units,
                s_recon_terms, t_in, t_fc, enc_hidden=32):
    params = {"nl": [], "enc": []}
    keys = jax.random.split(key, 2 * len(s_recon_terms))
    for j, s in enumerate(s_recon_terms):
        dim_in = 2 * s + latent_dim
        dim_out = 2 * output_dim * s
        k = jax.random.split(keys[j], 3)
        params["nl"].append(dict(
            w1=_linear(k[0], dim_in, hidden_units),
            b1=jnp.zeros((1, hidden_units), jnp.float32),
            w2=_linear(k[1], hidden_units, hidden_units),
            b2=jnp.zeros((1, hidden_units), jnp.float32),
            w3=_linear(k[2], hidden_units, dim_out),
            b3=jnp.zeros((1, dim_out), jnp.float32),
        ))
    for j in range(len(s_recon_terms)):
        k = jax.random.split(keys[len(s_recon_terms) + j], 3)
        params["enc"].append(dict(
            wo1=_linear(k[0], t_in * input_dim, enc_hidden),
            bo1=jnp.zeros((1, enc_hidden), jnp.float32),
            wf1=_linear(k[1], t_fc * input_dim, enc_hidden),
            bf1=jnp.zeros((1, enc_hidden), jnp.float32),
            w2=_linear(k[2], 2 * enc_hidden, latent_dim),
            b2=jnp.zeros((1, latent_dim), jnp.float32),
        ))
    return params


# ----------------------------------------------------------------------------
# Demo
# ----------------------------------------------------------------------------
if __name__ == "__main__":
    batch = 2
    input_dim = output_dim = 2          # recon is subtracted from observed_data
    latent_dim = 2
    hidden_units = 64                   # SphereSurfaceModel default
    input_timesteps = 8
    forecast_timesteps = 4
    output_timesteps = 8
    s_recon_terms = [5, 9, 13]
    avg_terms_list = [1, 1, 1]
    start_ks = [0]
    for s in s_recon_terms[:-1]:
        start_ks.append(start_ks[-1] + s)

    key = jax.random.PRNGKey(0)
    k_param, k_obs, k_fc = jax.random.split(key, 3)

    params = init_params(k_param, input_dim=input_dim, output_dim=output_dim,
                         latent_dim=latent_dim, hidden_units=hidden_units,
                         s_recon_terms=s_recon_terms,
                         t_in=input_timesteps, t_fc=forecast_timesteps)

    observed_data = jax.random.normal(
        k_obs, (batch, input_timesteps, input_dim), jnp.float32)
    available_forecasts = jax.random.normal(
        k_fc, (batch, forecast_timesteps, input_dim), jnp.float32)
    observed_tp = jnp.linspace(0.1, 0.8, input_timesteps, dtype=jnp.float32).reshape(1, -1)
    tp_to_predict = jnp.linspace(0.9, 1.6, output_timesteps, dtype=jnp.float32).reshape(1, -1)

    all_fcsts = hierarchical_forward(
        params, observed_data, available_forecasts, observed_tp, tp_to_predict,
        s_recon_terms=s_recon_terms, start_ks=start_ks,
        avg_terms_list=avg_terms_list, output_dim=output_dim,
        input_timesteps=input_timesteps)

    for f in all_fcsts:
        jax.block_until_ready(f)
        assert f.shape == (batch, output_timesteps, output_dim)
        assert bool(jnp.all(jnp.isfinite(f)))

    # Kernel vs pure-JAX f32 reference on block 0 (same latent, same time grid).
    blk0 = prepare_nl_params(params["nl"][0], terms=s_recon_terms[0],
                             start_k=start_ks[0], output_dim=output_dim)
    p0 = encoder_apply(params["enc"][0], observed_data, available_forecasts)
    all_tp = jnp.concatenate([observed_tp, tp_to_predict], axis=-1)
    Ttot = all_tp.shape[-1]
    out_k = laplace_reconstruct_pallas(blk0, p0, all_tp)[:, :Ttot, :output_dim]
    out_k = jax.block_until_ready(out_k).astype(jnp.float32)
    out_r = laplace_reconstruct_ref(params["nl"][0], p0, all_tp,
                                    terms=s_recon_terms[0], start_k=start_ks[0],
                                    output_dim=output_dim)
    err = float(jnp.max(jnp.abs(out_k - out_r)))
    ref_mag = float(jnp.max(jnp.abs(out_r)))
    assert err <= 0.1 * ref_mag + 1e-3, (err, ref_mag)

    print("KERNEL_OK")
</pallas_src>

<mosaic_0001>
module attributes {stable_mosaic.version = 11 : i64} {
  func.func @_nl_ilt_kernel(%arg0: i32, %arg1: i32, %arg2: memref<16x128xbf16, #tpu.memory_space<vmem>>, %arg3: memref<1x1x128xf32, #tpu.memory_space<vmem>>, %arg4: memref<128x128xbf16, #tpu.memory_space<vmem>>, %arg5: memref<128x128xbf16, #tpu.memory_space<vmem>>, %arg6: memref<1x128xf32, #tpu.memory_space<vmem>>, %arg7: memref<128x128xbf16, #tpu.memory_space<vmem>>, %arg8: memref<1x128xf32, #tpu.memory_space<vmem>>, %arg9: memref<256x128xf32, #tpu.memory_space<vmem>>, %arg10: memref<1x16x128xbf16, #tpu.memory_space<vmem>>) attributes {dimension_semantics = [#tpu.dimension_semantics<parallel>, #tpu.dimension_semantics<parallel>], iteration_bounds = array<i64: 1, 2>, scalar_prefetch = 0 : i64, scratch_operands = 0 : i64, tpu.core_type = #tpu.core_type<tc>, window_params = [{transform_indices = @transform_0, window_bounds = array<i64: 16, 128>}, {transform_indices = @transform_1, window_bounds = array<i64: 1, 1, 128>}, {pipeline_mode = #tpu.pipeline_mode<synchronous>, transform_indices = @transform_2, window_bounds = array<i64: 128, 128>}, {pipeline_mode = #tpu.pipeline_mode<synchronous>, transform_indices = @transform_3, window_bounds = array<i64: 128, 128>}, {pipeline_mode = #tpu.pipeline_mode<synchronous>, transform_indices = @transform_4, window_bounds = array<i64: 1, 128>}, {pipeline_mode = #tpu.pipeline_mode<synchronous>, transform_indices = @transform_5, window_bounds = array<i64: 128, 128>}, {pipeline_mode = #tpu.pipeline_mode<synchronous>, transform_indices = @transform_6, window_bounds = array<i64: 1, 128>}, {pipeline_mode = #tpu.pipeline_mode<synchronous>, transform_indices = @transform_7, window_bounds = array<i64: 256, 128>}, {transform_indices = @transform_8, window_bounds = array<i64: 1, 16, 128>}]} {
    %c0 = arith.constant 0 : index
    %c0_0 = arith.constant 0 : index
    %0 = vector.load %arg2[%c0, %c0_0] : memref<16x128xbf16, #tpu.memory_space<vmem>>, vector<16x128xbf16>
    %c0_1 = arith.constant 0 : index
    %c0_2 = arith.constant 0 : index
    %1 = vector.load %arg4[%c0_1, %c0_2] : memref<128x128xbf16, #tpu.memory_space<vmem>>, vector<128x128xbf16>
    %cst = arith.constant dense<0.000000e+00> : vector<16x128xf32>
    %2 = tpu.matmul %0, %1, %cst {dimension_numbers = #tpu.dot_dimension_numbers<[1], [0], [0], [1], [0, 0, 1, 1], [], []>} : vector<16x128xbf16>, vector<128x128xbf16>, vector<16x128xf32> -> vector<16x128xf32>
    %c0_3 = arith.constant 0 : index
    %c0_4 = arith.constant 0 : index
    %c0_5 = arith.constant 0 : index
    %3 = vector.load %arg3[%c0_3, %c0_4, %c0_5] : memref<1x1x128xf32, #tpu.memory_space<vmem>>, vector<1x1x128xf32>
    %4 = vector.shape_cast %3 : vector<1x1x128xf32> to vector<1x128xf32>
    %5 = vector.broadcast %4 : vector<1x128xf32> to vector<16x128xf32>
    %6 = arith.addf %2, %5 : vector<16x128xf32>
    %cst_6 = arith.constant 0.000000e+00 : f32
    %7 = vector.broadcast %cst_6 : f32 to vector<16x128xf32>
    %8 = arith.maximumf %6, %7 : vector<16x128xf32>
    %9 = arith.truncf %8 : vector<16x128xf32> to vector<16x128xbf16>
    %c0_7 = arith.constant 0 : index
    %c0_8 = arith.constant 0 : index
    %10 = vector.load %arg5[%c0_7, %c0_8] : memref<128x128xbf16, #tpu.memory_space<vmem>>, vector<128x128xbf16>
    %cst_9 = arith.constant dense<0.000000e+00> : vector<16x128xf32>
    %11 = tpu.matmul %9, %10, %cst_9 {dimension_numbers = #tpu.dot_dimension_numbers<[1], [0], [0], [1], [0, 0, 1, 1], [], []>} : vector<16x128xbf16>, vector<128x128xbf16>, vector<16x128xf32> -> vector<16x128xf32>
    %c0_10 = arith.constant 0 : index
    %c0_11 = arith.constant 0 : index
    %12 = vector.load %arg6[%c0_10, %c0_11] : memref<1x128xf32, #tpu.memory_space<vmem>>, vector<1x128xf32>
    %13 = vector.broadcast %12 : vector<1x128xf32> to vector<16x128xf32>
    %14 = arith.addf %11, %13 : vector<16x128xf32>
    %cst_12 = arith.constant 0.000000e+00 : f32
    %15 = vector.broadcast %cst_12 : f32 to vector<16x128xf32>
    %16 = arith.maximumf %14, %15 : vector<16x128xf32>
    %17 = arith.truncf %16 : vector<16x128xf32> to vector<16x128xbf16>
    %c0_13 = arith.constant 0 : index
    %c0_14 = arith.constant 0 : index
    %18 = vector.load %arg7[%c0_13, %c0_14] : memref<128x128xbf16, #tpu.memory_space<vmem>>, vector<128x128xbf16>
    %cst_15 = arith.constant dense<0.000000e+00> : vector<16x128xf32>
    %19 = tpu.matmul %17, %18, %cst_15 {dimension_numbers = #tpu.dot_dimension_numbers<[1], [0], [0], [1], [0, 0, 1, 1], [], []>} : vector<16x128xbf16>, vector<128x128xbf16>, vector<16x128xf32> -> vector<16x128xf32>
    %c0_16 = arith.constant 0 : index
    %c0_17 = arith.constant 0 : index
    %20 = vector.load %arg8[%c0_16, %c0_17] : memref<1x128xf32, #tpu.memory_space<vmem>>, vector<1x128xf32>
    %21 = vector.broadcast %20 : vector<1x128xf32> to vector<16x128xf32>
    %22 = arith.addf %19, %21 : vector<16x128xf32>
    %23 = tpu.iota {dimensions = array<i32: 1>} : vector<16x128xi32>
    %c10_i32 = arith.constant 10 : i32
    %24 = vector.broadcast %c10_i32 : i32 to vector<16x128xi32>
    %25 = arith.cmpi slt, %23, %24 : vector<16x128xi32>
    %c64_i32 = arith.constant 64 : i32
    %26 = vector.broadcast %c64_i32 : i32 to vector<16x128xi32>
    %27 = arith.cmpi sge, %23, %26 : vector<16x128xi32>
    %c74_i32 = arith.constant 74 : i32
    %28 = vector.broadcast %c74_i32 : i32 to vector<16x128xi32>
    %29 = arith.cmpi slt, %23, %28 : vector<16x128xi32>
    %30 = arith.andi %27, %29 : vector<16x128xi1>
    %cst_18 = arith.constant 1.57079637 : f32
    %cst_19 = arith.constant 0.000000e+00 : f32
    %31 = vector.broadcast %cst_18 : f32 to vector<16x128xf32>
    %32 = vector.broadcast %cst_19 : f32 to vector<16x128xf32>
    %33 = arith.select %30, %31, %32 : vector<16x128xi1>, vector<16x128xf32>
    %cst_20 = arith.constant 3.14159274 : f32
    %34 = vector.broadcast %cst_20 : f32 to vector<16x128xf32>
    %35 = arith.select %25, %34, %33 : vector<16x128xi1>, vector<16x128xf32>
    %36 = math.tanh %22 : vector<16x128xf32>
    %37 = arith.mulf %36, %35 : vector<16x128xf32>
    %38 = math.cos %37 : vector<16x128xf32>
    %39 = math.sin %37 : vector<16x128xf32>
    %cst_21 = arith.constant 5.000000e-01 : f32
    %40 = vector.broadcast %cst_21 : f32 to vector<16x128xf32>
    %41 = arith.mulf %37, %40 : vector<16x128xf32>
    %cst_22 = arith.constant 0.785398185 : f32
    %42 = vector.broadcast %cst_22 : f32 to vector<16x128xf32>
    %43 = arith.addf %41, %42 : vector<16x128xf32>
    %44 = math.tan %43 : vector<16x128xf32>
    %c64_i32_23 = arith.constant 64 : i32
    %45 = tpu.dynamic_rotate %44 by %c64_i32_23 dim 1 : vector<16x128xf32>, i32 -> vector<16x128xf32>
    %46 = arith.mulf %45, %38 : vector<16x128xf32>
    %47 = arith.mulf %45, %39 : vector<16x128xf32>
    %48 = tpu.concatenate %46, %47 in 1 : vector<16x128xf32>, vector<16x128xf32> -> vector<16x256xf32>
    %c0_24 = arith.constant 0 : index
    %c0_25 = arith.constant 0 : index
    %49 = vector.load %arg9[%c0_24, %c0_25] : memref<256x128xf32, #tpu.memory_space<vmem>>, vector<256x128xf32>
    %cst_26 = arith.constant dense<0.000000e+00> : vector<16x128xf32>
    %50 = tpu.matmul %48, %49, %cst_26 {dimension_numbers = #tpu.dot_dimension_numbers<[1], [0], [0], [1], [0, 0, 1, 1], [], []>} : vector<16x256xf32>, vector<256x128xf32>, vector<16x128xf32> -> vector<16x128xf32>
    %c0_27 = arith.constant 0 : index
    %c10 = arith.constant 10 : index
    %51 = vector.load %arg2[%c0_27, %c10] : memref<16x128xbf16, #tpu.memory_space<vmem>>, vector<16x1xbf16>
    %52 = arith.extf %51 : vector<16x1xbf16> to vector<16x1xf32>
    %53 = vector.broadcast %52 : vector<16x1xf32> to vector<16x128xf32>
    %54 = arith.mulf %53, %50 : vector<16x128xf32>
    %55 = arith.truncf %54 : vector<16x128xf32> to vector<16x128xbf16>
    %c0_28 = arith.constant 0 : index
    %c0_29 = arith.constant 0 : index
    %c0_30 = arith.constant 0 : index
    %56 = vector.load %arg10[%c0_28, %c0_29, %c0_30] : memref<1x16x128xbf16, #tpu.memory_space<vmem>>, vector<1x16x128xbf16>
    %57 = vector.shape_cast %56 : vector<1x16x128xbf16> to vector<16x128xbf16>
    %58 = vector.shape_cast %55 : vector<16x128xbf16> to vector<1x16x128xbf16>
    tpu.vector_store %arg10[%c0_28, %c0_29, %c0_30], %58 {strides = array<i32>} : memref<1x16x128xbf16, #tpu.memory_space<vmem>>, vector<1x16x128xbf16>,
    return
  }
  func.func @transform_0(%arg0: i32, %arg1: i32) -> (i32, i32) {
    %c0_i32 = arith.constant 0 : i32
    %c0_i32_0 = arith.constant 0 : i32
    return %arg0, %c0_i32 : i32, i32
  }
  func.func @transform_1(%arg0: i32, %arg1: i32) -> (i32, i32, i32) {
    %c0_i32 = arith.constant 0 : i32
    %c0_i32_0 = arith.constant 0 : i32
    %c0_i32_1 = arith.constant 0 : i32
    return %arg1, %c0_i32, %c0_i32_0 : i32, i32, i32
  }
  func.func @transform_2(%arg0: i32, %arg1: i32) -> (i32, i32) {
    %c0_i32 = arith.constant 0 : i32
    %c0_i32_0 = arith.constant 0 : i32
    %c0_i32_1 = arith.constant 0 : i32
    return %c0_i32, %c0_i32_0 : i32, i32
  }
  func.func @transform_3(%arg0: i32, %arg1: i32) -> (i32, i32) {
    %c0_i32 = arith.constant 0 : i32
    %c0_i32_0 = arith.constant 0 : i32
    %c0_i32_1 = arith.constant 0 : i32
    return %c0_i32, %c0_i32_0 : i32, i32
  }
  func.func @transform_4(%arg0: i32, %arg1: i32) -> (i32, i32) {
    %c0_i32 = arith.constant 0 : i32
    %c0_i32_0 = arith.constant 0 : i32
    %c0_i32_1 = arith.constant 0 : i32
    return %c0_i32, %c0_i32_0 : i32, i32
  }
  func.func @transform_5(%arg0: i32, %arg1: i32) -> (i32, i32) {
    %c0_i32 = arith.constant 0 : i32
    %c0_i32_0 = arith.constant 0 : i32
    %c0_i32_1 = arith.constant 0 : i32
    return %c0_i32, %c0_i32_0 : i32, i32
  }
  func.func @transform_6(%arg0: i32, %arg1: i32) -> (i32, i32) {
    %c0_i32 = arith.constant 0 : i32
    %c0_i32_0 = arith.constant 0 : i32
    %c0_i32_1 = arith.constant 0 : i32
    return %c0_i32, %c0_i32_0 : i32, i32
  }
  func.func @transform_7(%arg0: i32, %arg1: i32) -> (i32, i32) {
    %c0_i32 = arith.constant 0 : i32
    %c0_i32_0 = arith.constant 0 : i32
    %c0_i32_1 = arith.constant 0 : i32
    return %c0_i32, %c0_i32_0 : i32, i32
  }
  func.func @transform_8(%arg0: i32, %arg1: i32) -> (i32, i32, i32) {
    %c0_i32 = arith.constant 0 : i32
    %c0_i32_0 = arith.constant 0 : i32
    return %arg1, %arg0, %c0_i32 : i32, i32, i32
  }
}

</mosaic_0001>

<llo_original>
// kernel: tpu_custom_call.1
$region0: #{tpu_custom_call.1}
  #allocation0 [shape = 'u32[]', space=smem, size = 0x4, offset = 0x4, fixed_abs, tag = 'smem constant byte address 0x4 - core index']
  #allocation1 [shape = 'u32[72,128]{1,0:T(1,128)}', space=vmem, size = 0x9000, scoped, tag = 'internal scratch']
  %s0 = inlined_call_operand.hbm [shape: bf16[16,128], index: 0, kind: input, shape index: {}]
  %s1 = inlined_call_operand.hbm [shape: f32[2,1,128], index: 1, kind: input, shape index: {}]
  %s2 = inlined_call_operand.hbm [shape: bf16[128,128], index: 2, kind: input, shape index: {}]
  %s3 = inlined_call_operand.hbm [shape: bf16[128,128], index: 3, kind: input, shape index: {}]
  %s4 = inlined_call_operand.vmem [shape: f32[1,128], index: 4, kind: input, shape index: {}]
  %s5 = inlined_call_operand.hbm [shape: bf16[128,128], index: 5, kind: input, shape index: {}]
  %s6 = inlined_call_operand.vmem [shape: f32[1,128], index: 6, kind: input, shape index: {}]
  %s7 = inlined_call_operand.hbm [shape: f32[256,128], index: 7, kind: input, shape index: {}]
  %s8 = inlined_call_operand.hbm [shape: bf16[2,16,128], index: 8, kind: output, shape index: {}]
  %s9 = sld [smem:[#allocation0]]
  $region89: #{tpu_custom_call.1} parent=0
    _
  %s11 = ssub.s32 1, %s9
  %s12 = scalar_select 0, %s11, %s9
  $region1: #{tpu_custom_call.1} parent=0
    #allocation2 [shape = 'u8[4096]{0}', space=vmem, size = 0x1000, scoped, tag = 'input window, operand 0, single buffered']
    #allocation3 [shape = 's32[2]{0}', space=sflag, size = 0x8, scoped, tag = 'scoped memory for tpu_custom_call.1']
    #allocation4 [shape = 's32[2]{0}', space=sflag, size = 0x8, scoped, tag = 'scoped memory for tpu_custom_call.1']
    #allocation5 [shape = 'u8[1024]{0}', space=vmem, size = 0x400, scoped, tag = 'input window, operand 1']
    #allocation6 [shape = 's32[2]{0}', space=sflag, size = 0x8, scoped, tag = 'scoped memory for tpu_custom_call.1']
    #allocation7 [shape = 'u8[32768]{0}', space=vmem, size = 0x8000, scoped, tag = 'input window, operand 2, single buffered']
    #allocation8 [shape = 'u8[32768]{0}', space=vmem, size = 0x8000, scoped, tag = 'input window, operand 3, single buffered']
    #allocation9 [shape = 's32[1]{0}', space=sflag, size = 0x4, scoped, tag = 'scoped memory for tpu_custom_call.1']
    #allocation10 [shape = 'u8[32768]{0}', space=vmem, size = 0x8000, scoped, tag = 'input window, operand 5, single buffered']
    #allocation11 [shape = 'u8[131072]{0}', space=vmem, size = 0x20000, scoped, tag = 'input window, operand 7, single buffered']
    #allocation12 [shape = 's32[1]{0}', space=sflag, size = 0x4, scoped, tag = 'scoped memory for tpu_custom_call.1']
    #allocation13 [shape = 'u8[8192]{0}', space=vmem, size = 0x2000, scoped, tag = 'output window, operand 0']
    %13 = vsyncpa [#allocation3], 0
    %14 = vsyncpa [#allocation6], 0
    %s15 = scalar_lea.sflag [#allocation6], 1
    %16 = vsyncpa %s15, 0
    %17 = vsyncpa [#allocation9], 0
    %18 = vsyncpa [#allocation12], 0
    %19 = vsyncpa [#allocation4], 0
    %s20 = scalar_lea.sflag [#allocation4], 1
    %21 = vsyncpa %s20, 0
    loop: start=0, step=1, limit=4
    $region2: #{tpu_custom_call.1} parent=1 // loop_pre_header
      _
    $region3: #{tpu_custom_call.1} parent=1 // loop_header
      %s23 = sphi 0, %s27
      %p24 = scmp.ge.s32.totalorder %s23, 4
      %s30 = sphi 0, %s42
      %s31 = sphi 0, %s38
      %s32 = sphi 0, %s30
      %s33 = sphi 0, %s31
      %s34 = sphi 0, %s32
      %s35 = sphi 0, %s33
      %s45 = sphi 0, %s47
      %s48 = sphi 0, %s45
      %s49 = sphi 0, %s48
      %s65 = sphi 0, %s49
      %s71 = sphi 0, %s73
      %s74 = sphi 0, %s71
      %s75 = sphi 0, %s74
      %s91 = sphi 0, %s75
      %s95 = sphi 0, %s95
      %s97 = sphi 0, %s95
      %s98 = sphi 0, %s97
      %s112 = sphi 0, %s98
      %s116 = sphi 0, %s116
      %s118 = sphi 0, %s116
      %s119 = sphi 0, %s118
      %s133 = sphi 0, %s119
      %s137 = sphi 0, %s137
      %s139 = sphi 0, %s137
      %s140 = sphi 0, %s139
      %s154 = sphi 0, %s140
      %s158 = sphi 0, %s158
      %s160 = sphi 0, %s158
      %s161 = sphi 0, %s160
      %s175 = sphi 0, %s161
      %s179 = sphi 0, %s179
      %s181 = sphi 0, %s179
      %s182 = sphi 0, %s181
      %s196 = sphi 0, %s182
      %s200 = sphi 0, %s200
      %s202 = sphi 0, %s200
      %s203 = sphi 0, %s202
      %s217 = sphi 0, %s203
      %s225 = sphi 0, %s227
      %s228 = sphi 0, %s225
      %s229 = sphi 0, %s228
      %s245 = sphi 0, %s229
    $region4: #{tpu_custom_call.1} parent=1 // loop_header_branch
      %26 = sbr.rel (%p24) target = $region8
    $region5: #{tpu_custom_call.1} parent=1 // loop_body
      %s28 = ssub.s32 %s23, 1
      %s29 = ssub.s32 %s23, 2
      %s36 = sadd.s32 1, %s31
      %p37 = scmp.ge.s32.totalorder %s36, 2
      %s38 = scalar_select %p37, 0, %s36
      %s39 = sadd.s32 1, %s30
      %s40 = scalar_select %p37, %s39, %s30
      %p41 = scmp.ge.s32.totalorder %s40, 1
      %s42 = scalar_select %p41, 0, %s40
      %s43 = ssub.s32 %s30, %s42
      %p44 = scmp.eq.s32.totalorder %s43, 0
      %s46 = sadd.s32 %s45, 1
      %s47 = scalar_select %p44, %s45, %s46
      %p50 = pneg %p44
      %p51 = scmp.eq.s32.totalorder %s23, 1
      %p52 = por %p50, %p51
      %p53 = scmp.ne.s32.totalorder %s45, %s48
      %p54 = scmp.eq.s32.totalorder %s23, 0
      %p55 = por %p53, %p54
      %p56 = scmp.ne.s32.totalorder %s45, %s48
      %p57 = scmp.eq.s32.totalorder %s28, 1
      %p58 = por %p56, %p57
      %p59 = scmp.ne.s32.totalorder %s48, %s49
      %p60 = scmp.eq.s32.totalorder %s28, 0
      %p61 = por %p59, %p60
      %p62 = scmp.ne.s32.totalorder %s48, %s49
      %p63 = scmp.eq.s32.totalorder %s29, 1
      %p64 = por %p62, %p63
      %p66 = scmp.ne.s32.totalorder %s49, %s65
      %p67 = scmp.eq.s32.totalorder %s29, 0
      %p68 = por %p66, %p67
      %s69 = ssub.s32 %s31, %s38
      %p70 = scmp.eq.s32.totalorder %s69, 0
      %s72 = sadd.s32 %s71, 1
      %s73 = scalar_select %p70, %s71, %s72
      %p76 = pneg %p70
      %p77 = scmp.eq.s32.totalorder %s23, 1
      %p78 = por %p76, %p77
      %p79 = scmp.ne.s32.totalorder %s71, %s74
      %p80 = scmp.eq.s32.totalorder %s23, 0
      %p81 = por %p79, %p80
      %p82 = scmp.ne.s32.totalorder %s71, %s74
      %p83 = scmp.eq.s32.totalorder %s28, 1
      %p84 = por %p82, %p83
      %p85 = scmp.ne.s32.totalorder %s74, %s75
      %p86 = scmp.eq.s32.totalorder %s28, 0
      %p87 = por %p85, %p86
      %p88 = scmp.ne.s32.totalorder %s74, %s75
      %p89 = scmp.eq.s32.totalorder %s29, 1
      %p90 = por %p88, %p89
      %p92 = scmp.ne.s32.totalorder %s75, %s91
      %p93 = scmp.eq.s32.totalorder %s29, 0
      %p94 = por %p92, %p93
      %s96 = sadd.s32 %s95, 1
      %p99 = scmp.eq.s32.totalorder %s23, 1
      %p100 = scmp.ne.s32.totalorder %s95, %s97
      %p101 = scmp.eq.s32.totalorder %s23, 0
      %p102 = por %p100, %p101
      %p103 = scmp.ne.s32.totalorder %s95, %s97
      %p104 = scmp.eq.s32.totalorder %s28, 1
      %p105 = por %p103, %p104
      %p106 = scmp.ne.s32.totalorder %s97, %s98
      %p107 = scmp.eq.s32.totalorder %s28, 0
      %p108 = por %p106, %p107
      %p109 = scmp.ne.s32.totalorder %s97, %s98
      %p110 = scmp.eq.s32.totalorder %s29, 1
      %p111 = por %p109, %p110
      %p113 = scmp.ne.s32.totalorder %s98, %s112
      %p114 = scmp.eq.s32.totalorder %s29, 0
      %p115 = por %p113, %p114
      %s117 = sadd.s32 %s116, 1
      %p120 = scmp.eq.s32.totalorder %s23, 1
      %p121 = scmp.ne.s32.totalorder %s116, %s118
      %p122 = scmp.eq.s32.totalorder %s23, 0
      %p123 = por %p121, %p122
      %p124 = scmp.ne.s32.totalorder %s116, %s118
      %p125 = scmp.eq.s32.totalorder %s28, 1
      %p126 = por %p124, %p125
      %p127 = scmp.ne.s32.totalorder %s118, %s119
      %p128 = scmp.eq.s32.totalorder %s28, 0
      %p129 = por %p127, %p128
      %p130 = scmp.ne.s32.totalorder %s118, %s119
      %p131 = scmp.eq.s32.totalorder %s29, 1
      %p132 = por %p130, %p131
      %p134 = scmp.ne.s32.totalorder %s119, %s133
      %p135 = scmp.eq.s32.totalorder %s29, 0
      %p136 = por %p134, %p135
      %s138 = sadd.s32 %s137, 1
      %p141 = scmp.eq.s32.totalorder %s23, 1
      %p142 = scmp.ne.s32.totalorder %s137, %s139
      %p143 = scmp.eq.s32.totalorder %s23, 0
      %p144 = por %p142, %p143
      %p145 = scmp.ne.s32.totalorder %s137, %s139
      %p146 = scmp.eq.s32.totalorder %s28, 1
      %p147 = por %p145, %p146
      %p148 = scmp.ne.s32.totalorder %s139, %s140
      %p149 = scmp.eq.s32.totalorder %s28, 0
      %p150 = por %p148, %p149
      %p151 = scmp.ne.s32.totalorder %s139, %s140
      %p152 = scmp.eq.s32.totalorder %s29, 1
      %p153 = por %p151, %p152
      %p155 = scmp.ne.s32.totalorder %s140, %s154
      %p156 = scmp.eq.s32.totalorder %s29, 0
      %p157 = por %p155, %p156
      %s159 = sadd.s32 %s158, 1
      %p162 = scmp.eq.s32.totalorder %s23, 1
      %p163 = scmp.ne.s32.totalorder %s158, %s160
      %p164 = scmp.eq.s32.totalorder %s23, 0
      %p165 = por %p163, %p164
      %p166 = scmp.ne.s32.totalorder %s158, %s160
      %p167 = scmp.eq.s32.totalorder %s28, 1
      %p168 = por %p166, %p167
      %p169 = scmp.ne.s32.totalorder %s160, %s161
      %p170 = scmp.eq.s32.totalorder %s28, 0
      %p171 = por %p169, %p170
      %p172 = scmp.ne.s32.totalorder %s160, %s161
      %p173 = scmp.eq.s32.totalorder %s29, 1
      %p174 = por %p172, %p173
      %p176 = scmp.ne.s32.totalorder %s161, %s175
      %p177 = scmp.eq.s32.totalorder %s29, 0
      %p178 = por %p176, %p177
      %s180 = sadd.s32 %s179, 1
      %p183 = scmp.eq.s32.totalorder %s23, 1
      %p184 = scmp.ne.s32.totalorder %s179, %s181
      %p185 = scmp.eq.s32.totalorder %s23, 0
      %p186 = por %p184, %p185
      %p187 = scmp.ne.s32.totalorder %s179, %s181
      %p188 = scmp.eq.s32.totalorder %s28, 1
      %p189 = por %p187, %p188
      %p190 = scmp.ne.s32.totalorder %s181, %s182
      %p191 = scmp.eq.s32.totalorder %s28, 0
      %p192 = por %p190, %p191
      %p193 = scmp.ne.s32.totalorder %s181, %s182
      %p194 = scmp.eq.s32.totalorder %s29, 1
      %p195 = por %p193, %p194
      %p197 = scmp.ne.s32.totalorder %s182, %s196
      %p198 = scmp.eq.s32.totalorder %s29, 0
      %p199 = por %p197, %p198
      %s201 = sadd.s32 %s200, 1
      %p204 = scmp.eq.s32.totalorder %s23, 1
      %p205 = scmp.ne.s32.totalorder %s200, %s202
      %p206 = scmp.eq.s32.totalorder %s23, 0
      %p207 = por %p205, %p206
      %p208 = scmp.ne.s32.totalorder %s200, %s202
      %p209 = scmp.eq.s32.totalorder %s28, 1
      %p210 = por %p208, %p209
      %p211 = scmp.ne.s32.totalorder %s202, %s203
      %p212 = scmp.eq.s32.totalorder %s28, 0
      %p213 = por %p211, %p212
      %p214 = scmp.ne.s32.totalorder %s202, %s203
      %p215 = scmp.eq.s32.totalorder %s29, 1
      %p216 = por %p214, %p215
      %p218 = scmp.ne.s32.totalorder %s203, %s217
      %p219 = scmp.eq.s32.totalorder %s29, 0
      %p220 = por %p218, %p219
      %s221 = ssub.s32 %s31, %s38
      %s222 = ssub.s32 %s30, %s42
      %s223 = sor.u32 %s221, %s222
      %p224 = scmp.eq.s32.totalorder %s223, 0
      %s226 = sadd.s32 %s225, 1
      %s227 = scalar_select %p224, %s225, %s226
      %p230 = pneg %p224
      %p231 = scmp.eq.s32.totalorder %s23, 1
      %p232 = por %p230, %p231
      %p233 = scmp.ne.s32.totalorder %s225, %s228
      %p234 = scmp.eq.s32.totalorder %s23, 0
      %p235 = por %p233, %p234
      %p236 = scmp.ne.s32.totalorder %s225, %s228
      %p237 = scmp.eq.s32.totalorder %s28, 1
      %p238 = por %p236, %p237
      %p239 = scmp.ne.s32.totalorder %s228, %s229
      %p240 = scmp.eq.s32.totalorder %s28, 0
      %p241 = por %p239, %p240
      %p242 = scmp.ne.s32.totalorder %s228, %s229
      %p243 = scmp.eq.s32.totalorder %s29, 1
      %p244 = por %p242, %p243
      %p246 = scmp.ne.s32.totalorder %s229, %s245
      %p247 = scmp.eq.s32.totalorder %s29, 0
      %p248 = por %p246, %p247
      %p249 = scmp.le.s32.totalorder 1, %s23
      %p250 = scmp.lt.s32.totalorder %s23, 3
      %p251 = pnand %p249, %p250
      %p252 = pneg %p251
      // Predicated region
      $region9: #{tpu_custom_call.1} parent=5 // pred_check
        _
      $region10: #{tpu_custom_call.1} parent=5 // pred_check_branch
        %254 = sbr.rel (%p251) target = $region12
      $region11: #{tpu_custom_call.1} parent=5 // pred_region
        %s255 = ssub.s32 %s23, 1
        // Predicated region
        $region13: #{tpu_custom_call.1} parent=11 // pred_check
          %p256 = pneg %p61
        $region14: #{tpu_custom_call.1} parent=11 // pred_check_branch
          %258 = sbr.rel (%p256) target = $region16
        $region15: #{tpu_custom_call.1} parent=11 // pred_region
          %s259 = smul.u32 2, %s32
          %261 = vsyncadd [#allocation3], 0
          %s262 = smul.addr %s259, 4
          %s263 = scalar_lea.hbm %s0, %s262
          %s264 = sshll.u32 %s263, 4
          %s265 = int_to_ptr.hbm [resolvable:$true] %s264
          %s266 = sshll.u32 [#allocation2], 4
          %s267 = int_to_ptr.vmem [resolvable:$true] %s266
          %272 = dma.hbm_to_vmem [thread:$0]  %s265, 128, %s267, [#allocation3], 64, 64, 4
        $region16: #{tpu_custom_call.1} parent=11 // pred_fallthru
          _
        // Predicated region
        $region17: #{tpu_custom_call.1} parent=11 // pred_check
          %p273 = pneg %p108
        $region18: #{tpu_custom_call.1} parent=11 // pred_check_branch
          %275 = sbr.rel (%p273) target = $region20
        $region19: #{tpu_custom_call.1} parent=11 // pred_region
          %277 = vsyncadd [#allocation6], 0
          %s278 = sshll.u32 %s2, 4
          %s279 = int_to_ptr.hbm [resolvable:$true] %s278
          %s280 = sshll.u32 [#allocation7], 4
          %s281 = int_to_ptr.vmem [resolvable:$true] %s280
          %286 = dma.hbm_to_vmem [thread:$0]  %s279, 1024, %s281, [#allocation6], 64, 64, 4
        $region20: #{tpu_custom_call.1} parent=11 // pred_fallthru
          _
        // Predicated region
        $region21: #{tpu_custom_call.1} parent=11 // pred_check
          %p287 = pneg %p129
        $region22: #{tpu_custom_call.1} parent=11 // pred_check_branch
          %289 = sbr.rel (%p287) target = $region24
        $region23: #{tpu_custom_call.1} parent=11 // pred_region
          %291 = vsyncadd [#allocation9], 0
          %s292 = sshll.u32 %s3, 4
          %s293 = int_to_ptr.hbm [resolvable:$true] %s292
          %s294 = sshll.u32 [#allocation8], 4
          %s295 = int_to_ptr.vmem [resolvable:$true] %s294
          %300 = dma.hbm_to_vmem [thread:$0]  %s293, 1024, %s295, [#allocation9], 64, 64, 4
        $region24: #{tpu_custom_call.1} parent=11 // pred_fallthru
          _
        // Predicated region
        $region25: #{tpu_custom_call.1} parent=11 // pred_check
          %p301 = pneg %p150
        $region26: #{tpu_custom_call.1} parent=11 // pred_check_branch
          %303 = sbr.rel (%p301) target = $region28
        $region27: #{tpu_custom_call.1} parent=11 // pred_region
          _
        $region28: #{tpu_custom_call.1} parent=11 // pred_fallthru
          _
        // Predicated region
        $region29: #{tpu_custom_call.1} parent=11 // pred_check
          %p304 = pneg %p171
        $region30: #{tpu_custom_call.1} parent=11 // pred_check_branch
          %306 = sbr.rel (%p304) target = $region32
        $region31: #{tpu_custom_call.1} parent=11 // pred_region
          %308 = vsyncadd [#allocation9], 0
          %s309 = sshll.u32 %s5, 4
          %s310 = int_to_ptr.hbm [resolvable:$true] %s309
          %s311 = sshll.u32 [#allocation10], 4
          %s312 = int_to_ptr.vmem [resolvable:$true] %s311
          %317 = dma.hbm_to_vmem [thread:$0]  %s310, 1024, %s312, [#allocation9], 64, 64, 4
        $region32: #{tpu_custom_call.1} parent=11 // pred_fallthru
          _
        // Predicated region
        $region33: #{tpu_custom_call.1} parent=11 // pred_check
          %p318 = pneg %p192
        $region34: #{tpu_custom_call.1} parent=11 // pred_check_branch
          %320 = sbr.rel (%p318) target = $region36
        $region35: #{tpu_custom_call.1} parent=11 // pred_region
          _
        $region36: #{tpu_custom_call.1} parent=11 // pred_fallthru
          _
        // Predicated region
        $region37: #{tpu_custom_call.1} parent=11 // pred_check
          %p321 = pneg %p213
        $region38: #{tpu_custom_call.1} parent=11 // pred_check_branch
          %323 = sbr.rel (%p321) target = $region40
        $region39: #{tpu_custom_call.1} parent=11 // pred_region
          %325 = vsyncadd [#allocation12], 0
          %s326 = sshll.u32 %s7, 4
          %s327 = int_to_ptr.hbm [resolvable:$true] %s326
          %s328 = sshll.u32 [#allocation11], 4
          %s329 = int_to_ptr.vmem [resolvable:$true] %s328
          %334 = dma.hbm_to_vmem [thread:$0]  %s327, 4096, %s329, [#allocation12], 128, 128, 8
        $region40: #{tpu_custom_call.1} parent=11 // pred_fallthru
          _
      $region12: #{tpu_custom_call.1} parent=5 // pred_fallthru
        _
      %p335 = scmp.lt.s32.totalorder %s23, 2
      // Predicated region
      $region41: #{tpu_custom_call.1} parent=5 // pred_check
        %p336 = pneg %p335
      $region42: #{tpu_custom_call.1} parent=5 // pred_check_branch
        %338 = sbr.rel (%p336) target = $region44
      $region43: #{tpu_custom_call.1} parent=5 // pred_region
        // Predicated region
        $region45: #{tpu_custom_call.1} parent=43 // pred_check
          %p339 = pneg %p81
        $region46: #{tpu_custom_call.1} parent=43 // pred_check_branch
          %341 = sbr.rel (%p339) target = $region48
        $region47: #{tpu_custom_call.1} parent=43 // pred_region
          %s342 = sand.u32 %s23, 1
          %s343 = scalar_lea.sflag [#allocation6], %s342
          %s344 = sand.u32 %s71, 1
          %s345 = scalar_lea.vmem [#allocation5], %s344
          %347 = vsyncadd %s343, 0
          %s348 = scalar_lea.hbm %s1, %s31
          %s350 = sshll.u32 %s348, 4
          %s351 = int_to_ptr.hbm [resolvable:$true] %s350
          %s352 = sshll.u32 %s345, 4
          %s353 = int_to_ptr.vmem [resolvable:$true] %s352
          %355 = dma.hbm_to_vmem [thread:$0]  %s351, 16, %s353, %s343
        $region48: #{tpu_custom_call.1} parent=43 // pred_fallthru
          _
      $region44: #{tpu_custom_call.1} parent=5 // pred_fallthru
        _
      %p356 = scmp.le.s32.totalorder 1, %s23
      %p357 = scmp.lt.s32.totalorder %s23, 3
      %p358 = pnand %p356, %p357
      %p359 = pneg %p358
      // Predicated region
      $region49: #{tpu_custom_call.1} parent=5 // pred_check
        _
      $region50: #{tpu_custom_call.1} parent=5 // pred_check_branch
        %361 = sbr.rel (%p358) target = $region52
      $region51: #{tpu_custom_call.1} parent=5 // pred_region
        %s362 = ssub.s32 %s23, 1
        // Predicated region
        $region53: #{tpu_custom_call.1} parent=51 // pred_check
          %p363 = pneg %p61
        $region54: #{tpu_custom_call.1} parent=51 // pred_check_branch
          %365 = sbr.rel (%p363) target = $region56
        $region55: #{tpu_custom_call.1} parent=51 // pred_region
          %367 = dma.done [#allocation3], 128
        $region56: #{tpu_custom_call.1} parent=51 // pred_fallthru
          _
        %s368 = sand.u32 %s28, 1
        %s369 = scalar_lea.sflag [#allocation6], %s368
        %s370 = sand.u32 %s74, 1
        %s371 = scalar_lea.vmem [#allocation5], %s370
        // Predicated region
        $region57: #{tpu_custom_call.1} parent=51 // pred_check
          %p372 = pneg %p87
        $region58: #{tpu_custom_call.1} parent=51 // pred_check_branch
          %374 = sbr.rel (%p372) target = $region60
        $region59: #{tpu_custom_call.1} parent=51 // pred_region
          %376 = dma.done %s369, 16
        $region60: #{tpu_custom_call.1} parent=51 // pred_fallthru
          _
        // Predicated region
        $region61: #{tpu_custom_call.1} parent=51 // pred_check
          %p377 = pneg %p108
        $region62: #{tpu_custom_call.1} parent=51 // pred_check_branch
          %379 = sbr.rel (%p377) target = $region64
        $region63: #{tpu_custom_call.1} parent=51 // pred_region
          %381 = dma.done [#allocation6], 1024
        $region64: #{tpu_custom_call.1} parent=51 // pred_fallthru
          _
        // Predicated region
        $region65: #{tpu_custom_call.1} parent=51 // pred_check
          %p382 = pneg %p129
        $region66: #{tpu_custom_call.1} parent=51 // pred_check_branch
          %384 = sbr.rel (%p382) target = $region68
        $region67: #{tpu_custom_call.1} parent=51 // pred_region
          %386 = dma.done [#allocation9], 1024
        $region68: #{tpu_custom_call.1} parent=51 // pred_fallthru
          _
        // Predicated region
        $region69: #{tpu_custom_call.1} parent=51 // pred_check
          %p387 = pneg %p171
        $region70: #{tpu_custom_call.1} parent=51 // pred_check_branch
          %389 = sbr.rel (%p387) target = $region72
        $region71: #{tpu_custom_call.1} parent=51 // pred_region
          %391 = dma.done [#allocation9], 1024
        $region72: #{tpu_custom_call.1} parent=51 // pred_fallthru
          _
        // Predicated region
        $region73: #{tpu_custom_call.1} parent=51 // pred_check
          %p392 = pneg %p213
        $region74: #{tpu_custom_call.1} parent=51 // pred_check_branch
          %394 = sbr.rel (%p392) target = $region76
        $region75: #{tpu_custom_call.1} parent=51 // pred_region
          %396 = dma.done [#allocation12], 4096
        $region76: #{tpu_custom_call.1} parent=51 // pred_fallthru
          _
        %p397 = pneg %p61
        %p398 = pneg %p58
        %s399 = sand.u32 %s28, 1
        %s400 = scalar_lea.sflag [#allocation6], %s399
        %s401 = sand.u32 %s74, 1
        %s402 = scalar_lea.vmem [#allocation5], %s401
        %p403 = pneg %p87
        %p404 = pneg %p84
        %p405 = pneg %p108
        %p406 = pneg %p105
        %p407 = pneg %p129
        %p408 = pneg %p126
        %p409 = pneg %p150
        %p410 = pneg %p147
        %p411 = pneg %p171
        %p412 = pneg %p168
        %p413 = pneg %p192
        %p414 = pneg %p189
        %p415 = pneg %p213
        %p416 = pneg %p210
        %p417 = pneg %p241
        %p418 = pneg %p238
        %s419 = sand.u32 %s228, 1
        %s420 = scalar_lea.sflag [#allocation4], %s419
        %s421 = sand.u32 %s228, 1
        %s422 = smul.addr %s421, 8
        %s423 = scalar_lea.vmem [#allocation13], %s422
        %s424 = smul.u32 2, %s32
        %s425 = smul.u32 2, %s32
        %v426 = vld [vmem:[#allocation2] sm:$0xf]
        %v427 = vld [vmem:[#allocation2 + $0x4] sm:$0xf]
        %v428 = vld [vmem:[#allocation7] sm:$0xf]
        %v429 = vld [vmem:[#allocation7 + $0x4] sm:$0xf]
        %v430 = vld [vmem:[#allocation7 + $0x8] sm:$0xf]
        %v431 = vld [vmem:[#allocation7 + $0xc] sm:$0xf]
        %v432 = vld [vmem:[#allocation7 + $0x10] sm:$0xf]
        %v433 = vld [vmem:[#allocation7 + $0x14] sm:$0xf]
        %v434 = vld [vmem:[#allocation7 + $0x18] sm:$0xf]
        %v435 = vld [vmem:[#allocation7 + $0x1c] sm:$0xf]
        %v436 = vld [vmem:[#allocation7 + $0x20] sm:$0xf]
        %v437 = vld [vmem:[#allocation7 + $0x24] sm:$0xf]
        %v438 = vld [vmem:[#allocation7 + $0x28] sm:$0xf]
        %v439 = vld [vmem:[#allocation7 + $0x2c] sm:$0xf]
        %v440 = vld [vmem:[#allocation7 + $0x30] sm:$0xf]
        %v441 = vld [vmem:[#allocation7 + $0x34] sm:$0xf]
        %v442 = vld [vmem:[#allocation7 + $0x38] sm:$0xf]
        %v443 = vld [vmem:[#allocation7 + $0x3c] sm:$0xf]
        %v444 = vld [vmem:[%s371] sm:$0x1]
        %v446 = vperm.slane %v444, 0
        %v450 = vunpack.c.l.b16 %v426
        %v451 = vunpack.c.l.b16 %v427
        %v452 = vpack.c.b16 %v451, %v450
        %v470 = vunpack.c.l.b16 %v428
        %v471 = vunpack.c.l.b16 %v429
        %v472 = vunpack.c.l.b16 %v430
        %v473 = vunpack.c.l.b16 %v431
        %v474 = vunpack.c.l.b16 %v432
        %v475 = vunpack.c.l.b16 %v433
        %v476 = vunpack.c.l.b16 %v434
        %v477 = vunpack.c.l.b16 %v435
        %v478 = vunpack.c.l.b16 %v436
        %v479 = vunpack.c.l.b16 %v437
        %v480 = vunpack.c.l.b16 %v438
        %v481 = vunpack.c.l.b16 %v439
        %v482 = vunpack.c.l.b16 %v440
        %v483 = vunpack.c.l.b16 %v441
        %v484 = vunpack.c.l.b16 %v442
        %v485 = vunpack.c.l.b16 %v443
        %v486 = vpack.c.b16 %v471, %v470
        %v487 = vpack.c.b16 %v473, %v472
        %v488 = vpack.c.b16 %v475, %v474
        %v489 = vpack.c.b16 %v477, %v476
        %v490 = vpack.c.b16 %v479, %v478
        %v491 = vpack.c.b16 %v481, %v480
        %v492 = vpack.c.b16 %v483, %v482
        %v493 = vpack.c.b16 %v485, %v484
        %502 = vmatpush.bf16.msra.mxu0 %v493
        %503 = vmatpush.bf16.msra.mxu0 %v492
        %504 = vmatpush.bf16.msra.mxu0 %v491
        %505 = vmatpush.bf16.msra.mxu0 %v490
        %506 = vmatpush.bf16.msra.mxu0 %v489
        %507 = vmatpush.bf16.msra.mxu0 %v488
        %508 = vmatpush.bf16.msra.mxu0 %v487
        %509 = vmatpush.bf16.msra.mxu0 %v486
        %510 = vmatmul.bf16.gmra.mxu0 %v452
        %v511 = vpop.f32.mrf.mxu0
        %v512 = vadd.f32 %v446, %v511
        %v513 = vpop.f32.mrf.mxu0
        %v514 = vadd.f32 %v446, %v513
        %515 = vdwg.mxu0
        %v516 = vmax.f32 %v512, 0.0
        %v517 = vmax.f32 %v514, 0.0
        %v518 = vpack.c.bf16 %v517, %v516
        %v519 = vld [vmem:[#allocation8] sm:$0xf]
        %v520 = vld [vmem:[#allocation8 + $0x4] sm:$0xf]
        %v521 = vld [vmem:[#allocation8 + $0x8] sm:$0xf]
        %v522 = vld [vmem:[#allocation8 + $0xc] sm:$0xf]
        %v523 = vld [vmem:[#allocation8 + $0x10] sm:$0xf]
        %v524 = vld [vmem:[#allocation8 + $0x14] sm:$0xf]
        %v525 = vld [vmem:[#allocation8 + $0x18] sm:$0xf]
        %v526 = vld [vmem:[#allocation8 + $0x1c] sm:$0xf]
        %v527 = vld [vmem:[#allocation8 + $0x20] sm:$0xf]
        %v528 = vld [vmem:[#allocation8 + $0x24] sm:$0xf]
        %v529 = vld [vmem:[#allocation8 + $0x28] sm:$0xf]
        %v530 = vld [vmem:[#allocation8 + $0x2c] sm:$0xf]
        %v531 = vld [vmem:[#allocation8 + $0x30] sm:$0xf]
        %v532 = vld [vmem:[#allocation8 + $0x34] sm:$0xf]
        %v533 = vld [vmem:[#allocation8 + $0x38] sm:$0xf]
        %v534 = vld [vmem:[#allocation8 + $0x3c] sm:$0xf]
        %v535 = vld [vmem:[%s4] sm:$0x1]
        %v537 = vperm.slane %v535, 0
        %v555 = vunpack.c.l.b16 %v519
        %v556 = vunpack.c.l.b16 %v520
        %v557 = vunpack.c.l.b16 %v521
        %v558 = vunpack.c.l.b16 %v522
        %v559 = vunpack.c.l.b16 %v523
        %v560 = vunpack.c.l.b16 %v524
        %v561 = vunpack.c.l.b16 %v525
        %v562 = vunpack.c.l.b16 %v526
        %v563 = vunpack.c.l.b16 %v527
        %v564 = vunpack.c.l.b16 %v528
        %v565 = vunpack.c.l.b16 %v529
        %v566 = vunpack.c.l.b16 %v530
        %v567 = vunpack.c.l.b16 %v531
        %v568 = vunpack.c.l.b16 %v532
        %v569 = vunpack.c.l.b16 %v533
        %v570 = vunpack.c.l.b16 %v534
        %v571 = vpack.c.b16 %v556, %v555
        %v572 = vpack.c.b16 %v558, %v557
        %v573 = vpack.c.b16 %v560, %v559
        %v574 = vpack.c.b16 %v562, %v561
        %v575 = vpack.c.b16 %v564, %v563
        %v576 = vpack.c.b16 %v566, %v565
        %v577 = vpack.c.b16 %v568, %v567
        %v578 = vpack.c.b16 %v570, %v569
        %587 = vmatpush.bf16.msra.mxu0 %v578
        %588 = vmatpush.bf16.msra.mxu0 %v577
        %589 = vmatpush.bf16.msra.mxu0 %v576
        %590 = vmatpush.bf16.msra.mxu0 %v575
        %591 = vmatpush.bf16.msra.mxu0 %v574
        %592 = vmatpush.bf16.msra.mxu0 %v573
        %593 = vmatpush.bf16.msra.mxu0 %v572
        %594 = vmatpush.bf16.msra.mxu0 %v571
        %595 = vmatmul.bf16.gmra.mxu0 %v518
        %v596 = vpop.f32.mrf.mxu0
        %v597 = vadd.f32 %v537, %v596
        %v598 = vpop.f32.mrf.mxu0
        %v599 = vadd.f32 %v537, %v598
        %600 = vdwg.mxu0
        %v601 = vmax.f32 %v597, 0.0
        %v602 = vmax.f32 %v599, 0.0
        %v603 = vpack.c.bf16 %v602, %v601
        %v604 = vld [vmem:[#allocation10] sm:$0xf]
        %v605 = vld [vmem:[#allocation10 + $0x4] sm:$0xf]
        %v606 = vld [vmem:[#allocation10 + $0x8] sm:$0xf]
        %v607 = vld [vmem:[#allocation10 + $0xc] sm:$0xf]
        %v608 = vld [vmem:[#allocation10 + $0x10] sm:$0xf]
        %v609 = vld [vmem:[#allocation10 + $0x14] sm:$0xf]
        %v610 = vld [vmem:[#allocation10 + $0x18] sm:$0xf]
        %v611 = vld [vmem:[#allocation10 + $0x1c] sm:$0xf]
        %v612 = vld [vmem:[#allocation10 + $0x20] sm:$0xf]
        %v613 = vld [vmem:[#allocation10 + $0x24] sm:$0xf]
        %v614 = vld [vmem:[#allocation10 + $0x28] sm:$0xf]
        %v615 = vld [vmem:[#allocation10 + $0x2c] sm:$0xf]
        %v616 = vld [vmem:[#allocation10 + $0x30] sm:$0xf]
        %v617 = vld [vmem:[#allocation10 + $0x34] sm:$0xf]
        %v618 = vld [vmem:[#allocation10 + $0x38] sm:$0xf]
        %v619 = vld [vmem:[#allocation10 + $0x3c] sm:$0xf]
        %v620 = vld [vmem:[%s6] sm:$0x1]
        %v622 = vperm.slane %v620, 0
        %v640 = vunpack.c.l.b16 %v604
        %v641 = vunpack.c.l.b16 %v605
        %v642 = vunpack.c.l.b16 %v606
        %v643 = vunpack.c.l.b16 %v607
        %v644 = vunpack.c.l.b16 %v608
        %v645 = vunpack.c.l.b16 %v609
        %v646 = vunpack.c.l.b16 %v610
        %v647 = vunpack.c.l.b16 %v611
        %v648 = vunpack.c.l.b16 %v612
        %v649 = vunpack.c.l.b16 %v613
        %v650 = vunpack.c.l.b16 %v614
        %v651 = vunpack.c.l.b16 %v615
        %v652 = vunpack.c.l.b16 %v616
        %v653 = vunpack.c.l.b16 %v617
        %v654 = vunpack.c.l.b16 %v618
        %v655 = vunpack.c.l.b16 %v619
        %v656 = vpack.c.b16 %v641, %v640
        %v657 = vpack.c.b16 %v643, %v642
        %v658 = vpack.c.b16 %v645, %v644
        %v659 = vpack.c.b16 %v647, %v646
        %v660 = vpack.c.b16 %v649, %v648
        %v661 = vpack.c.b16 %v651, %v650
        %v662 = vpack.c.b16 %v653, %v652
        %v663 = vpack.c.b16 %v655, %v654
        %672 = vmatpush.bf16.msra.mxu0 %v663
        %673 = vmatpush.bf16.msra.mxu0 %v662
        %674 = vmatpush.bf16.msra.mxu0 %v661
        %675 = vmatpush.bf16.msra.mxu0 %v660
        %676 = vmatpush.bf16.msra.mxu0 %v659
        %677 = vmatpush.bf16.msra.mxu0 %v658
        %678 = vmatpush.bf16.msra.mxu0 %v657
        %679 = vmatpush.bf16.msra.mxu0 %v656
        %680 = vmatmul.bf16.gmra.mxu0 %v603
        %v681 = vpop.f32.mrf.mxu0
        %v682 = vadd.f32 %v622, %v681
        %v683 = vpop.f32.mrf.mxu0
        %v684 = vadd.f32 %v622, %v683
        %685 = vdwg.mxu0
        %v686 = vlaneseq
        %v687 = vand.u32 %v686, 127
        %vm688 = vcmp.lt.s32.totalorder %v687, 10
        %vm689 = vcmp.ge.s32.totalorder %v687, 64
        %vm690 = vcmp.lt.s32.totalorder %v687, 74
        %vm691 = vmand %vm689, %vm690
        %v692 = vsel %vm691, 1.5707964, 0.0
        %v693 = vsel %vm688, 3.1415927, %v692
        %v694 = vtanh.pop %v682
        %v695 = vtanh.pop %v684
        %v696 = vmul.f32 %v694, %v693
        %v697 = vmul.f32 %v695, %v693
        %v698 = vand.u32 2147483647, %v696
        %vm699 = vcmp.le.f32.partialorder %v698, 0.7853982
        %vm700 = vcmp.lt.s32.totalorder %v696, 0
        %v701 = vand.u32 %v696, 2139095040
        %v702 = vshrl.u32 %v701, 23
        %v703 = vsub.s32 %v702, 127
        %v704 = vand.u32 2147483647, %v696
        %v705 = vand.u32 %v704, 8388607
        %v706 = vor.u32 %v705, 8388608
        %v707 = vsub.s32 0, %v706
        %v708 = vadd.s32 %v703, 1
        %vm709 = vcmp.gt.s32.totalorder %v708, 0
        %v710 = vsel %vm709, %v708, 0
        %v711 = vshrl.u32 %v710, 5
        %v712 = vand.u32 %v710, 31
        %v713 = vsub.s32 32, %v712
        %v714 = vshrl.u32 683565275, %v713
        %v715 = vshll.u32 683565275, %v712
        %v716 = vshrl.u32 2475754826, %v713
        %v717 = vor.u32 %v715, %v716
        %v718 = vshll.u32 2475754826, %v712
        %v719 = vshrl.u32 2131351028, %v713
        %v720 = vor.u32 %v718, %v719
        %v721 = vshll.u32 2131351028, %v712
        %v722 = vshrl.u32 2102212464, %v713
        %v723 = vor.u32 %v721, %v722
        %v724 = vshll.u32 2102212464, %v712
        %v725 = vshrl.u32 920167782, %v713
        %v726 = vor.u32 %v724, %v725
        %v727 = vshll.u32 920167782, %v712
        %v728 = vshrl.u32 1326507024, %v713
        %v729 = vor.u32 %v727, %v728
        %vm730 = vcmp.lt.s32.totalorder %v711, 1
        %vm731 = vcmp.lt.s32.totalorder %v711, 2
        %vm732 = vcmp.lt.s32.totalorder %v711, 3
        %vm733 = vcmp.lt.s32.totalorder %v711, 4
        %v734 = vsel %vm730, %v714, %v717
        %v735 = vsel %vm733, %v723, 2102212464
        %v736 = vsel %vm732, %v720, %v735
        %v737 = vsel %vm731, %v734, %v736
        %v738 = vsel %vm730, %v717, %v720
        %v739 = vsel %vm733, %v726, 920167782
        %v740 = vsel %vm732, %v723, %v739
        %v741 = vsel %vm731, %v738, %v740
        %v742 = vsel %vm730, %v720, %v723
        %v743 = vsel %vm733, %v729, 1326507024
        %v744 = vsel %vm732, %v726, %v743
        %v745 = vsel %vm731, %v742, %v744
        %v746 = vshll.u32 %v706, 8
        %v747 = vand.u32 %v746, 65535
        %v748 = vshrl.u32 %v746, 16
        %v749 = vand.u32 %v745, 65535
        %v750 = vshrl.u32 %v745, 16
        %v751 = vmul.u32 %v747, %v749
        %v752 = vmul.u32 %v747, %v750
        %v753 = vmul.u32 %v748, %v749
        %v754 = vmul.u32 %v748, %v750
        %v755 = vshll.u32 %v752, 16
        %v756 = vshrl.u32 %v752, 16
        %v757 = vshll.u32 %v753, 16
        %v758 = vshrl.u32 %v753, 16
        %vm759 = vc.u32 %v751, %v755
        %v760 = vsel %vm759, 1, 0
        %v761 = vadd.s32 %v751, %v755
        %v762 = vadd.s32 %v754, %v760
        %vm763 = vc.u32 %v761, %v757
        %v764 = vsel %vm763, 1, 0
        %v765 = vadd.s32 %v761, %v757
        %v766 = vadd.s32 %v762, %v764
        %v767 = vadd.s32 %v766, %v756
        %v768 = vadd.s32 %v767, %v758
        %v769 = vand.u32 %v746, 65535
        %v770 = vshrl.u32 %v746, 16
        %v771 = vand.u32 %v741, 65535
        %v772 = vshrl.u32 %v741, 16
        %v773 = vmul.u32 %v769, %v771
        %v774 = vmul.u32 %v769, %v772
        %v775 = vmul.u32 %v770, %v771
        %v776 = vmul.u32 %v770, %v772
        %v777 = vshll.u32 %v774, 16
        %v778 = vshrl.u32 %v774, 16
        %v779 = vshll.u32 %v775, 16
        %v780 = vshrl.u32 %v775, 16
        %vm781 = vc.u32 %v773, %v777
        %v782 = vsel %vm781, 1, 0
        %v783 = vadd.s32 %v773, %v777
        %v784 = vadd.s32 %v776, %v782
        %vm785 = vc.u32 %v783, %v779
        %v786 = vsel %vm785, 1, 0
        %v787 = vadd.s32 %v783, %v779
        %v788 = vadd.s32 %v784, %v786
        %v789 = vadd.s32 %v788, %v778
        %v790 = vadd.s32 %v789, %v780
        %v791 = vmul.u32 %v746, %v737
        %v792 = vadd.s32 %v768, %v787
        %vm793 = vc.u32 %v768, %v787
        %v794 = vadd.s32 %v790, 1
        %v795 = vsel %vm793, %v794, %v790
        %v796 = vadd.s32 %v791, %v795
        %v797 = vadd.s32 %v796, 536870912
        %v798 = vshrl.u32 %v797, 30
        %v799 = vshll.u32 %v798, 30
        %v800 = vsub.s32 %v796, %v799
        %vm801 = vcmp.lt.s32.totalorder %v800, 0
        %v802 = vsub.s32 0, %v800
        %v803 = vsel %vm801, %v802, %v800
        %v804 = vclz %v803
        %v805 = vsub.s32 %v804, 2
        %vm806 = vcmp.gt.s32.totalorder 0, %v805
        %v807 = vsel %vm806, 0, %v805
        %v808 = vsub.s32 32, %v807
        %v809 = vshll.u32 %v800, %v807
        %v810 = vshrl.u32 %v792, %v808
        %v811 = vor.u32 %v809, %v810
        %v812 = vsub.s32 4294967266, %v807
        %v813 = vadd.s32 %v812, 127
        %v814 = vshll.u32 %v813, 23
        %v815 = vor.u32 4788187, %v814
        %v816 = vand.u32 2147483647, %v815
        %v818 = vcvt.s32.f32 %v811
        %v819 = vmul.f32 %v818, %v816
        %v820 = vxor.u32 %v819, 2147483648
        %v821 = vsel %vm700, %v820, %v819
        %v822 = vsub.s32 4, %v798
        %v823 = vsel %vm700, %v822, %v798
        %v824 = vsel %vm699, %v696, %v821
        %v825 = vsel %vm699, 0, %v823
        %v826 = vmul.f32 %v824, %v824
        %v827 = vmul.f32 %v826, -0.001358992
        %v828 = vadd.f32 %v827, 0.041655596
        %v829 = vmul.f32 %v826, %v828
        %v830 = vadd.f32 %v829, -0.4999988
        %v831 = vmul.f32 %v826, %v830
        %v832 = vadd.f32 1.0, %v831
        %v833 = vmul.f32 %v824, %v824
        %v834 = vmul.f32 %v833, -0.00019511016
        %v835 = vadd.f32 %v834, 0.008332121
        %v836 = vmul.f32 %v833, %v835
        %v837 = vadd.f32 %v836, -0.16666654
        %v838 = vmul.f32 %v833, %v837
        %v839 = vadd.f32 %v838, 1.0
        %v840 = vmul.f32 %v839, %v824
        %vm841 = vweird.f32 %v696
        %v842 = vand.u32 %v825, 3
        %vm843 = vcmp.lt.s32.totalorder %v842, 2
        %vm844 = vcmp.eq.s32.totalorder %v842, 0
        %v845 = vxor.u32 %v840, 2147483648
        %v846 = vsel %vm844, %v832, %v845
        %vm847 = vcmp.eq.s32.totalorder %v842, 2
        %v848 = vxor.u32 %v832, 2147483648
        %v849 = vsel %vm847, %v848, %v840
        %v850 = vsel %vm843, %v846, %v849
        %v851 = vsel %vm841, nan, %v850
        %v852 = vand.u32 2147483647, %v697
        %vm853 = vcmp.le.f32.partialorder %v852, 0.7853982
        %vm854 = vcmp.lt.s32.totalorder %v697, 0
        %v855 = vand.u32 %v697, 2139095040
        %v856 = vshrl.u32 %v855, 23
        %v857 = vsub.s32 %v856, 127
        %v858 = vand.u32 2147483647, %v697
        %v859 = vand.u32 %v858, 8388607
        %v860 = vor.u32 %v859, 8388608
        %v861 = vsub.s32 0, %v860
        %v862 = vadd.s32 %v857, 1
        %vm863 = vcmp.gt.s32.totalorder %v862, 0
        %v864 = vsel %vm863, %v862, 0
        %v865 = vshrl.u32 %v864, 5
        %v866 = vand.u32 %v864, 31
        %v867 = vsub.s32 32, %v866
        %v868 = vshrl.u32 683565275, %v867
        %v869 = vshll.u32 683565275, %v866
        %v870 = vshrl.u32 2475754826, %v867
        %v871 = vor.u32 %v869, %v870
        %v872 = vshll.u32 2475754826, %v866
        %v873 = vshrl.u32 2131351028, %v867
        %v874 = vor.u32 %v872, %v873
        %v875 = vshll.u32 2131351028, %v866
        %v876 = vshrl.u32 2102212464, %v867
        %v877 = vor.u32 %v875, %v876
        %v878 = vshll.u32 2102212464, %v866
        %v879 = vshrl.u32 920167782, %v867
        %v880 = vor.u32 %v878, %v879
        %v881 = vshll.u32 920167782, %v866
        %v882 = vshrl.u32 1326507024, %v867
        %v883 = vor.u32 %v881, %v882
        %vm884 = vcmp.lt.s32.totalorder %v865, 1
        %vm885 = vcmp.lt.s32.totalorder %v865, 2
        %vm886 = vcmp.lt.s32.totalorder %v865, 3
        %vm887 = vcmp.lt.s32.totalorder %v865, 4
        %v888 = vsel %vm884, %v868, %v871
        %v889 = vsel %vm887, %v877, 2102212464
        %v890 = vsel %vm886, %v874, %v889
        %v891 = vsel %vm885, %v888, %v890
        %v892 = vsel %vm884, %v871, %v874
        %v893 = vsel %vm887, %v880, 920167782
        %v894 = vsel %vm886, %v877, %v893
        %v895 = vsel %vm885, %v892, %v894
        %v896 = vsel %vm884, %v874, %v877
        %v897 = vsel %vm887, %v883, 1326507024
        %v898 = vsel %vm886, %v880, %v897
        %v899 = vsel %vm885, %v896, %v898
        %v900 = vshll.u32 %v860, 8
        %v901 = vand.u32 %v900, 65535
        %v902 = vshrl.u32 %v900, 16
        %v903 = vand.u32 %v899, 65535
        %v904 = vshrl.u32 %v899, 16
        %v905 = vmul.u32 %v901, %v903
        %v906 = vmul.u32 %v901, %v904
        %v907 = vmul.u32 %v902, %v903
        %v908 = vmul.u32 %v902, %v904
        %v909 = vshll.u32 %v906, 16
        %v910 = vshrl.u32 %v906, 16
        %v911 = vshll.u32 %v907, 16
        %v912 = vshrl.u32 %v907, 16
        %vm913 = vc.u32 %v905, %v909
        %v914 = vsel %vm913, 1, 0
        %v915 = vadd.s32 %v905, %v909
        %v916 = vadd.s32 %v908, %v914
        %vm917 = vc.u32 %v915, %v911
        %v918 = vsel %vm917, 1, 0
        %v919 = vadd.s32 %v915, %v911
        %v920 = vadd.s32 %v916, %v918
        %v921 = vadd.s32 %v920, %v910
        %v922 = vadd.s32 %v921, %v912
        %v923 = vand.u32 %v900, 65535
        %v924 = vshrl.u32 %v900, 16
        %v925 = vand.u32 %v895, 65535
        %v926 = vshrl.u32 %v895, 16
        %v927 = vmul.u32 %v923, %v925
        %v928 = vmul.u32 %v923, %v926
        %v929 = vmul.u32 %v924, %v925
        %v930 = vmul.u32 %v924, %v926
        %v931 = vshll.u32 %v928, 16
        %v932 = vshrl.u32 %v928, 16
        %v933 = vshll.u32 %v929, 16
        %v934 = vshrl.u32 %v929, 16
        %vm935 = vc.u32 %v927, %v931
        %v936 = vsel %vm935, 1, 0
        %v937 = vadd.s32 %v927, %v931
        %v938 = vadd.s32 %v930, %v936
        %vm939 = vc.u32 %v937, %v933
        %v940 = vsel %vm939, 1, 0
        %v941 = vadd.s32 %v937, %v933
        %v942 = vadd.s32 %v938, %v940
        %v943 = vadd.s32 %v942, %v932
        %v944 = vadd.s32 %v943, %v934
        %v945 = vmul.u32 %v900, %v891
        %v946 = vadd.s32 %v922, %v941
        %vm947 = vc.u32 %v922, %v941
        %v948 = vadd.s32 %v944, 1
        %v949 = vsel %vm947, %v948, %v944
        %v950 = vadd.s32 %v945, %v949
        %v951 = vadd.s32 %v950, 536870912
        %v952 = vshrl.u32 %v951, 30
        %v953 = vshll.u32 %v952, 30
        %v954 = vsub.s32 %v950, %v953
        %vm955 = vcmp.lt.s32.totalorder %v954, 0
        %v956 = vsub.s32 0, %v954
        %v957 = vsel %vm955, %v956, %v954
        %v958 = vclz %v957
        %v959 = vsub.s32 %v958, 2
        %vm960 = vcmp.gt.s32.totalorder 0, %v959
        %v961 = vsel %vm960, 0, %v959
        %v962 = vsub.s32 32, %v961
        %v963 = vshll.u32 %v954, %v961
        %v964 = vshrl.u32 %v946, %v962
        %v965 = vor.u32 %v963, %v964
        %v966 = vsub.s32 4294967266, %v961
        %v967 = vadd.s32 %v966, 127
        %v968 = vshll.u32 %v967, 23
        %v969 = vor.u32 4788187, %v968
        %v970 = vand.u32 2147483647, %v969
        %v972 = vcvt.s32.f32 %v965
        %v973 = vmul.f32 %v972, %v970
        %v974 = vxor.u32 %v973, 2147483648
        %v975 = vsel %vm854, %v974, %v973
        %v976 = vsub.s32 4, %v952
        %v977 = vsel %vm854, %v976, %v952
        %v978 = vsel %vm853, %v697, %v975
        %v979 = vsel %vm853, 0, %v977
        %v980 = vmul.f32 %v978, %v978
        %v981 = vmul.f32 %v980, -0.001358992
        %v982 = vadd.f32 %v981, 0.041655596
        %v983 = vmul.f32 %v980, %v982
        %v984 = vadd.f32 %v983, -0.4999988
        %v985 = vmul.f32 %v980, %v984
        %v986 = vadd.f32 1.0, %v985
        %v987 = vmul.f32 %v978, %v978
        %v988 = vmul.f32 %v987, -0.00019511016
        %v989 = vadd.f32 %v988, 0.008332121
        %v990 = vmul.f32 %v987, %v989
        %v991 = vadd.f32 %v990, -0.16666654
        %v992 = vmul.f32 %v987, %v991
        %v993 = vadd.f32 %v992, 1.0
        %v994 = vmul.f32 %v993, %v978
        %vm995 = vweird.f32 %v697
        %v996 = vand.u32 %v979, 3
        %vm997 = vcmp.lt.s32.totalorder %v996, 2
        %vm998 = vcmp.eq.s32.totalorder %v996, 0
        %v999 = vxor.u32 %v994, 2147483648
        %v1000 = vsel %vm998, %v986, %v999
        %vm1001 = vcmp.eq.s32.totalorder %v996, 2
        %v1002 = vxor.u32 %v986, 2147483648
        %v1003 = vsel %vm1001, %v1002, %v994
        %v1004 = vsel %vm997, %v1000, %v1003
        %v1005 = vsel %vm995, nan, %v1004
        %v1006 = vand.u32 2147483647, %v696
        %vm1007 = vcmp.le.f32.partialorder %v1006, 0.7853982
        %vm1008 = vcmp.lt.s32.totalorder %v696, 0
        %v1009 = vand.u32 %v696, 2139095040
        %v1010 = vshrl.u32 %v1009, 23
        %v1011 = vsub.s32 %v1010, 127
        %v1012 = vand.u32 2147483647, %v696
        %v1013 = vand.u32 %v1012, 8388607
        %v1014 = vor.u32 %v1013, 8388608
        %v1015 = vsub.s32 0, %v1014
        %v1016 = vadd.s32 %v1011, 1
        %vm1017 = vcmp.gt.s32.totalorder %v1016, 0
        %v1018 = vsel %vm1017, %v1016, 0
        %v1019 = vshrl.u32 %v1018, 5
        %v1020 = vand.u32 %v1018, 31
        %v1021 = vsub.s32 32, %v1020
        %v1022 = vshrl.u32 683565275, %v1021
        %v1023 = vshll.u32 683565275, %v1020
        %v1024 = vshrl.u32 2475754826, %v1021
        %v1025 = vor.u32 %v1023, %v1024
        %v1026 = vshll.u32 2475754826, %v1020
        %v1027 = vshrl.u32 2131351028, %v1021
        %v1028 = vor.u32 %v1026, %v1027
        %v1029 = vshll.u32 2131351028, %v1020
        %v1030 = vshrl.u32 2102212464, %v1021
        %v1031 = vor.u32 %v1029, %v1030
        %v1032 = vshll.u32 2102212464, %v1020
        %v1033 = vshrl.u32 920167782, %v1021
        %v1034 = vor.u32 %v1032, %v1033
        %v1035 = vshll.u32 920167782, %v1020
        %v1036 = vshrl.u32 1326507024, %v1021
        %v1037 = vor.u32 %v1035, %v1036
        %vm1038 = vcmp.lt.s32.totalorder %v1019, 1
        %vm1039 = vcmp.lt.s32.totalorder %v1019, 2
        %vm1040 = vcmp.lt.s32.totalorder %v1019, 3
        %vm1041 = vcmp.lt.s32.totalorder %v1019, 4
        %v1042 = vsel %vm1038, %v1022, %v1025
        %v1043 = vsel %vm1041, %v1031, 2102212464
        %v1044 = vsel %vm1040, %v1028, %v1043
        %v1045 = vsel %vm1039, %v1042, %v1044
        %v1046 = vsel %vm1038, %v1025, %v1028
        %v1047 = vsel %vm1041, %v1034, 920167782
        %v1048 = vsel %vm1040, %v1031, %v1047
        %v1049 = vsel %vm1039, %v1046, %v1048
        %v1050 = vsel %vm1038, %v1028, %v1031
        %v1051 = vsel %vm1041, %v1037, 1326507024
        %v1052 = vsel %vm1040, %v1034, %v1051
        %v1053 = vsel %vm1039, %v1050, %v1052
        %v1054 = vshll.u32 %v1014, 8
        %v1055 = vand.u32 %v1054, 65535
        %v1056 = vshrl.u32 %v1054, 16
        %v1057 = vand.u32 %v1053, 65535
        %v1058 = vshrl.u32 %v1053, 16
        %v1059 = vmul.u32 %v1055, %v1057
        %v1060 = vmul.u32 %v1055, %v1058
        %v1061 = vmul.u32 %v1056, %v1057
        %v1062 = vmul.u32 %v1056, %v1058
        %v1063 = vshll.u32 %v1060, 16
        %v1064 = vshrl.u32 %v1060, 16
        %v1065 = vshll.u32 %v1061, 16
        %v1066 = vshrl.u32 %v1061, 16
        %vm1067 = vc.u32 %v1059, %v1063
        %v1068 = vsel %vm1067, 1, 0
        %v1069 = vadd.s32 %v1059, %v1063
        %v1070 = vadd.s32 %v1062, %v1068
        %vm1071 = vc.u32 %v1069, %v1065
        %v1072 = vsel %vm1071, 1, 0
        %v1073 = vadd.s32 %v1069, %v1065
        %v1074 = vadd.s32 %v1070, %v1072
        %v1075 = vadd.s32 %v1074, %v1064
        %v1076 = vadd.s32 %v1075, %v1066
        %v1077 = vand.u32 %v1054, 65535
        %v1078 = vshrl.u32 %v1054, 16
        %v1079 = vand.u32 %v1049, 65535
        %v1080 = vshrl.u32 %v1049, 16
        %v1081 = vmul.u32 %v1077, %v1079
        %v1082 = vmul.u32 %v1077, %v1080
        %v1083 = vmul.u32 %v1078, %v1079
        %v1084 = vmul.u32 %v1078, %v1080
        %v1085 = vshll.u32 %v1082, 16
        %v1086 = vshrl.u32 %v1082, 16
        %v1087 = vshll.u32 %v1083, 16
        %v1088 = vshrl.u32 %v1083, 16
        %vm1089 = vc.u32 %v1081, %v1085
        %v1090 = vsel %vm1089, 1, 0
        %v1091 = vadd.s32 %v1081, %v1085
        %v1092 = vadd.s32 %v1084, %v1090
        %vm1093 = vc.u32 %v1091, %v1087
        %v1094 = vsel %vm1093, 1, 0
        %v1095 = vadd.s32 %v1091, %v1087
        %v1096 = vadd.s32 %v1092, %v1094
        %v1097 = vadd.s32 %v1096, %v1086
        %v1098 = vadd.s32 %v1097, %v1088
        %v1099 = vmul.u32 %v1054, %v1045
        %v1100 = vadd.s32 %v1076, %v1095
        %vm1101 = vc.u32 %v1076, %v1095
        %v1102 = vadd.s32 %v1098, 1
        %v1103 = vsel %vm1101, %v1102, %v1098
        %v1104 = vadd.s32 %v1099, %v1103
        %v1105 = vadd.s32 %v1104, 536870912
        %v1106 = vshrl.u32 %v1105, 30
        %v1107 = vshll.u32 %v1106, 30
        %v1108 = vsub.s32 %v1104, %v1107
        %vm1109 = vcmp.lt.s32.totalorder %v1108, 0
        %v1110 = vsub.s32 0, %v1108
        %v1111 = vsel %vm1109, %v1110, %v1108
        %v1112 = vclz %v1111
        %v1113 = vsub.s32 %v1112, 2
        %vm1114 = vcmp.gt.s32.totalorder 0, %v1113
        %v1115 = vsel %vm1114, 0, %v1113
        %v1116 = vsub.s32 32, %v1115
        %v1117 = vshll.u32 %v1108, %v1115
        %v1118 = vshrl.u32 %v1100, %v1116
        %v1119 = vor.u32 %v1117, %v1118
        %v1120 = vsub.s32 4294967266, %v1115
        %v1121 = vadd.s32 %v1120, 127
        %v1122 = vshll.u32 %v1121, 23
        %v1123 = vor.u32 4788187, %v1122
        %v1124 = vand.u32 2147483647, %v1123
        %v1126 = vcvt.s32.f32 %v1119
        %v1127 = vmul.f32 %v1126, %v1124
        %v1128 = vxor.u32 %v1127, 2147483648
        %v1129 = vsel %vm1008, %v1128, %v1127
        %v1130 = vsub.s32 4, %v1106
        %v1131 = vsel %vm1008, %v1130, %v1106
        %v1132 = vsel %vm1007, %v696, %v1129
        %v1133 = vsel %vm1007, 0, %v1131
        %v1134 = vmul.f32 %v1132, %v1132
        %v1135 = vmul.f32 %v1134, -0.001358992
        %v1136 = vadd.f32 %v1135, 0.041655596
        %v1137 = vmul.f32 %v1134, %v1136
        %v1138 = vadd.f32 %v1137, -0.4999988
        %v1139 = vmul.f32 %v1134, %v1138
        %v1140 = vadd.f32 1.0, %v1139
        %v1141 = vmul.f32 %v1132, %v1132
        %v1142 = vmul.f32 %v1141, -0.00019511016
        %v1143 = vadd.f32 %v1142, 0.008332121
        %v1144 = vmul.f32 %v1141, %v1143
        %v1145 = vadd.f32 %v1144, -0.16666654
        %v1146 = vmul.f32 %v1141, %v1145
        %v1147 = vadd.f32 %v1146, 1.0
        %v1148 = vmul.f32 %v1147, %v1132
        %vm1149 = vweird.f32 %v696
        %v1150 = vadd.s32 %v1133, 3
        %v1151 = vand.u32 %v1150, 3
        %vm1152 = vcmp.lt.s32.totalorder %v1151, 2
        %vm1153 = vcmp.eq.s32.totalorder %v1151, 0
        %v1154 = vxor.u32 %v1148, 2147483648
        %v1155 = vsel %vm1153, %v1140, %v1154
        %vm1156 = vcmp.eq.s32.totalorder %v1151, 2
        %v1157 = vxor.u32 %v1140, 2147483648
        %v1158 = vsel %vm1156, %v1157, %v1148
        %v1159 = vsel %vm1152, %v1155, %v1158
        %v1160 = vsel %vm1149, nan, %v1159
        %v1161 = vand.u32 2147483647, %v697
        %vm1162 = vcmp.le.f32.partialorder %v1161, 0.7853982
        %vm1163 = vcmp.lt.s32.totalorder %v697, 0
        %v1164 = vand.u32 %v697, 2139095040
        %v1165 = vshrl.u32 %v1164, 23
        %v1166 = vsub.s32 %v1165, 127
        %v1167 = vand.u32 2147483647, %v697
        %v1168 = vand.u32 %v1167, 8388607
        %v1169 = vor.u32 %v1168, 8388608
        %v1170 = vsub.s32 0, %v1169
        %v1171 = vadd.s32 %v1166, 1
        %vm1172 = vcmp.gt.s32.totalorder %v1171, 0
        %v1173 = vsel %vm1172, %v1171, 0
        %v1174 = vshrl.u32 %v1173, 5
        %v1175 = vand.u32 %v1173, 31
        %v1176 = vsub.s32 32, %v1175
        %v1177 = vshrl.u32 683565275, %v1176
        %v1178 = vshll.u32 683565275, %v1175
        %v1179 = vshrl.u32 2475754826, %v1176
        %v1180 = vor.u32 %v1178, %v1179
        %v1181 = vshll.u32 2475754826, %v1175
        %v1182 = vshrl.u32 2131351028, %v1176
        %v1183 = vor.u32 %v1181, %v1182
        %v1184 = vshll.u32 2131351028, %v1175
        %v1185 = vshrl.u32 2102212464, %v1176
        %v1186 = vor.u32 %v1184, %v1185
        %v1187 = vshll.u32 2102212464, %v1175
        %v1188 = vshrl.u32 920167782, %v1176
        %v1189 = vor.u32 %v1187, %v1188
        %v1190 = vshll.u32 920167782, %v1175
        %v1191 = vshrl.u32 1326507024, %v1176
        %v1192 = vor.u32 %v1190, %v1191
        %vm1193 = vcmp.lt.s32.totalorder %v1174, 1
        %vm1194 = vcmp.lt.s32.totalorder %v1174, 2
        %vm1195 = vcmp.lt.s32.totalorder %v1174, 3
        %vm1196 = vcmp.lt.s32.totalorder %v1174, 4
        %v1197 = vsel %vm1193, %v1177, %v1180
        %v1198 = vsel %vm1196, %v1186, 2102212464
        %v1199 = vsel %vm1195, %v1183, %v1198
        %v1200 = vsel %vm1194, %v1197, %v1199
        %v1201 = vsel %vm1193, %v1180, %v1183
        %v1202 = vsel %vm1196, %v1189, 920167782
        %v1203 = vsel %vm1195, %v1186, %v1202
        %v1204 = vsel %vm1194, %v1201, %v1203
        %v1205 = vsel %vm1193, %v1183, %v1186
        %v1206 = vsel %vm1196, %v1192, 1326507024
        %v1207 = vsel %vm1195, %v1189, %v1206
        %v1208 = vsel %vm1194, %v1205, %v1207
        %v1209 = vshll.u32 %v1169, 8
        %v1210 = vand.u32 %v1209, 65535
        %v1211 = vshrl.u32 %v1209, 16
        %v1212 = vand.u32 %v1208, 65535
        %v1213 = vshrl.u32 %v1208, 16
        %v1214 = vmul.u32 %v1210, %v1212
        %v1215 = vmul.u32 %v1210, %v1213
        %v1216 = vmul.u32 %v1211, %v1212
        %v1217 = vmul.u32 %v1211, %v1213
        %v1218 = vshll.u32 %v1215, 16
        %v1219 = vshrl.u32 %v1215, 16
        %v1220 = vshll.u32 %v1216, 16
        %v1221 = vshrl.u32 %v1216, 16
        %vm1222 = vc.u32 %v1214, %v1218
        %v1223 = vsel %vm1222, 1, 0
        %v1224 = vadd.s32 %v1214, %v1218
        %v1225 = vadd.s32 %v1217, %v1223
        %vm1226 = vc.u32 %v1224, %v1220
        %v1227 = vsel %vm1226, 1, 0
        %v1228 = vadd.s32 %v1224, %v1220
        %v1229 = vadd.s32 %v1225, %v1227
        %v1230 = vadd.s32 %v1229, %v1219
        %v1231 = vadd.s32 %v1230, %v1221
        %v1232 = vand.u32 %v1209, 65535
        %v1233 = vshrl.u32 %v1209, 16
        %v1234 = vand.u32 %v1204, 65535
        %v1235 = vshrl.u32 %v1204, 16
        %v1236 = vmul.u32 %v1232, %v1234
        %v1237 = vmul.u32 %v1232, %v1235
        %v1238 = vmul.u32 %v1233, %v1234
        %v1239 = vmul.u32 %v1233, %v1235
        %v1240 = vshll.u32 %v1237, 16
        %v1241 = vshrl.u32 %v1237, 16
        %v1242 = vshll.u32 %v1238, 16
        %v1243 = vshrl.u32 %v1238, 16
        %vm1244 = vc.u32 %v1236, %v1240
        %v1245 = vsel %vm1244, 1, 0
        %v1246 = vadd.s32 %v1236, %v1240
        %v1247 = vadd.s32 %v1239, %v1245
        %vm1248 = vc.u32 %v1246, %v1242
        %v1249 = vsel %vm1248, 1, 0
        %v1250 = vadd.s32 %v1246, %v1242
        %v1251 = vadd.s32 %v1247, %v1249
        %v1252 = vadd.s32 %v1251, %v1241
        %v1253 = vadd.s32 %v1252, %v1243
        %v1254 = vmul.u32 %v1209, %v1200
        %v1255 = vadd.s32 %v1231, %v1250
        %vm1256 = vc.u32 %v1231, %v1250
        %v1257 = vadd.s32 %v1253, 1
        %v1258 = vsel %vm1256, %v1257, %v1253
        %v1259 = vadd.s32 %v1254, %v1258
        %v1260 = vadd.s32 %v1259, 536870912
        %v1261 = vshrl.u32 %v1260, 30
        %v1262 = vshll.u32 %v1261, 30
        %v1263 = vsub.s32 %v1259, %v1262
        %vm1264 = vcmp.lt.s32.totalorder %v1263, 0
        %v1265 = vsub.s32 0, %v1263
        %v1266 = vsel %vm1264, %v1265, %v1263
        %v1267 = vclz %v1266
        %v1268 = vsub.s32 %v1267, 2
        %vm1269 = vcmp.gt.s32.totalorder 0, %v1268
        %v1270 = vsel %vm1269, 0, %v1268
        %v1271 = vsub.s32 32, %v1270
        %v1272 = vshll.u32 %v1263, %v1270
        %v1273 = vshrl.u32 %v1255, %v1271
        %v1274 = vor.u32 %v1272, %v1273
        %v1275 = vsub.s32 4294967266, %v1270
        %v1276 = vadd.s32 %v1275, 127
        %v1277 = vshll.u32 %v1276, 23
        %v1278 = vor.u32 4788187, %v1277
        %v1279 = vand.u32 2147483647, %v1278
        %v1281 = vcvt.s32.f32 %v1274
        %v1282 = vmul.f32 %v1281, %v1279
        %v1283 = vxor.u32 %v1282, 2147483648
        %v1284 = vsel %vm1163, %v1283, %v1282
        %v1285 = vsub.s32 4, %v1261
        %v1286 = vsel %vm1163, %v1285, %v1261
        %v1287 = vsel %vm1162, %v697, %v1284
        %v1288 = vsel %vm1162, 0, %v1286
        %v1289 = vmul.f32 %v1287, %v1287
        %v1290 = vmul.f32 %v1289, -0.001358992
        %v1291 = vadd.f32 %v1290, 0.041655596
        %v1292 = vmul.f32 %v1289, %v1291
        %v1293 = vadd.f32 %v1292, -0.4999988
        %v1294 = vmul.f32 %v1289, %v1293
        %v1295 = vadd.f32 1.0, %v1294
        %v1296 = vmul.f32 %v1287, %v1287
        %v1297 = vmul.f32 %v1296, -0.00019511016
        %v1298 = vadd.f32 %v1297, 0.008332121
        %v1299 = vmul.f32 %v1296, %v1298
        %v1300 = vadd.f32 %v1299, -0.16666654
        %v1301 = vmul.f32 %v1296, %v1300
        %v1302 = vadd.f32 %v1301, 1.0
        %v1303 = vmul.f32 %v1302, %v1287
        %vm1304 = vweird.f32 %v697
        %v1305 = vadd.s32 %v1288, 3
        %v1306 = vand.u32 %v1305, 3
        %vm1307 = vcmp.lt.s32.totalorder %v1306, 2
        %vm1308 = vcmp.eq.s32.totalorder %v1306, 0
        %v1309 = vxor.u32 %v1303, 2147483648
        %v1310 = vsel %vm1308, %v1295, %v1309
        %vm1311 = vcmp.eq.s32.totalorder %v1306, 2
        %v1312 = vxor.u32 %v1295, 2147483648
        %v1313 = vsel %vm1311, %v1312, %v1303
        %v1314 = vsel %vm1307, %v1310, %v1313
        %v1315 = vsel %vm1304, nan, %v1314
        %v1316 = vmul.f32 %v696, 0.5
        %v1317 = vmul.f32 %v697, 0.5
        %v1318 = vadd.f32 %v1316, 0.7853982
        %v1319 = vadd.f32 %v1317, 0.7853982
        %v1320 = vand.u32 2147483647, %v1318
        %vm1321 = vcmp.le.f32.partialorder %v1320, 0.7853982
        %vm1322 = vcmp.lt.s32.totalorder %v1318, 0
        %v1323 = vand.u32 %v1318, 2139095040
        %v1324 = vshrl.u32 %v1323, 23
        %v1325 = vsub.s32 %v1324, 127
        %v1326 = vand.u32 2147483647, %v1318
        %v1327 = vand.u32 %v1326, 8388607
        %v1328 = vor.u32 %v1327, 8388608
        %v1329 = vsub.s32 0, %v1328
        %v1330 = vadd.s32 %v1325, 1
        %vm1331 = vcmp.gt.s32.totalorder %v1330, 0
        %v1332 = vsel %vm1331, %v1330, 0
        %v1333 = vshrl.u32 %v1332, 5
        %v1334 = vand.u32 %v1332, 31
        %v1335 = vsub.s32 32, %v1334
        %v1336 = vshrl.u32 683565275, %v1335
        %v1337 = vshll.u32 683565275, %v1334
        %v1338 = vshrl.u32 2475754826, %v1335
        %v1339 = vor.u32 %v1337, %v1338
        %v1340 = vshll.u32 2475754826, %v1334
        %v1341 = vshrl.u32 2131351028, %v1335
        %v1342 = vor.u32 %v1340, %v1341
        %v1343 = vshll.u32 2131351028, %v1334
        %v1344 = vshrl.u32 2102212464, %v1335
        %v1345 = vor.u32 %v1343, %v1344
        %v1346 = vshll.u32 2102212464, %v1334
        %v1347 = vshrl.u32 920167782, %v1335
        %v1348 = vor.u32 %v1346, %v1347
        %v1349 = vshll.u32 920167782, %v1334
        %v1350 = vshrl.u32 1326507024, %v1335
        %v1351 = vor.u32 %v1349, %v1350
        %vm1352 = vcmp.lt.s32.totalorder %v1333, 1
        %vm1353 = vcmp.lt.s32.totalorder %v1333, 2
        %vm1354 = vcmp.lt.s32.totalorder %v1333, 3
        %vm1355 = vcmp.lt.s32.totalorder %v1333, 4
        %v1356 = vsel %vm1352, %v1336, %v1339
        %v1357 = vsel %vm1355, %v1345, 2102212464
        %v1358 = vsel %vm1354, %v1342, %v1357
        %v1359 = vsel %vm1353, %v1356, %v1358
        %v1360 = vsel %vm1352, %v1339, %v1342
        %v1361 = vsel %vm1355, %v1348, 920167782
        %v1362 = vsel %vm1354, %v1345, %v1361
        %v1363 = vsel %vm1353, %v1360, %v1362
        %v1364 = vsel %vm1352, %v1342, %v1345
        %v1365 = vsel %vm1355, %v1351, 1326507024
        %v1366 = vsel %vm1354, %v1348, %v1365
        %v1367 = vsel %vm1353, %v1364, %v1366
        %v1368 = vshll.u32 %v1328, 8
        %v1369 = vand.u32 %v1368, 65535
        %v1370 = vshrl.u32 %v1368, 16
        %v1371 = vand.u32 %v1367, 65535
        %v1372 = vshrl.u32 %v1367, 16
        %v1373 = vmul.u32 %v1369, %v1371
        %v1374 = vmul.u32 %v1369, %v1372
        %v1375 = vmul.u32 %v1370, %v1371
        %v1376 = vmul.u32 %v1370, %v1372
        %v1377 = vshll.u32 %v1374, 16
        %v1378 = vshrl.u32 %v1374, 16
        %v1379 = vshll.u32 %v1375, 16
        %v1380 = vshrl.u32 %v1375, 16
        %vm1381 = vc.u32 %v1373, %v1377
        %v1382 = vsel %vm1381, 1, 0
        %v1383 = vadd.s32 %v1373, %v1377
        %v1384 = vadd.s32 %v1376, %v1382
        %vm1385 = vc.u32 %v1383, %v1379
        %v1386 = vsel %vm1385, 1, 0
        %v1387 = vadd.s32 %v1383, %v1379
        %v1388 = vadd.s32 %v1384, %v1386
        %v1389 = vadd.s32 %v1388, %v1378
        %v1390 = vadd.s32 %v1389, %v1380
        %v1391 = vand.u32 %v1368, 65535
        %v1392 = vshrl.u32 %v1368, 16
        %v1393 = vand.u32 %v1363, 65535
        %v1394 = vshrl.u32 %v1363, 16
        %v1395 = vmul.u32 %v1391, %v1393
        %v1396 = vmul.u32 %v1391, %v1394
        %v1397 = vmul.u32 %v1392, %v1393
        %v1398 = vmul.u32 %v1392, %v1394
        %v1399 = vshll.u32 %v1396, 16
        %v1400 = vshrl.u32 %v1396, 16
        %v1401 = vshll.u32 %v1397, 16
        %v1402 = vshrl.u32 %v1397, 16
        %vm1403 = vc.u32 %v1395, %v1399
        %v1404 = vsel %vm1403, 1, 0
        %v1405 = vadd.s32 %v1395, %v1399
        %v1406 = vadd.s32 %v1398, %v1404
        %vm1407 = vc.u32 %v1405, %v1401
        %v1408 = vsel %vm1407, 1, 0
        %v1409 = vadd.s32 %v1405, %v1401
        %v1410 = vadd.s32 %v1406, %v1408
        %v1411 = vadd.s32 %v1410, %v1400
        %v1412 = vadd.s32 %v1411, %v1402
        %v1413 = vmul.u32 %v1368, %v1359
        %v1414 = vadd.s32 %v1390, %v1409
        %vm1415 = vc.u32 %v1390, %v1409
        %v1416 = vadd.s32 %v1412, 1
        %v1417 = vsel %vm1415, %v1416, %v1412
        %v1418 = vadd.s32 %v1413, %v1417
        %v1419 = vadd.s32 %v1418, 536870912
        %v1420 = vshrl.u32 %v1419, 30
        %v1421 = vshll.u32 %v1420, 30
        %v1422 = vsub.s32 %v1418, %v1421
        %vm1423 = vcmp.lt.s32.totalorder %v1422, 0
        %v1424 = vsub.s32 0, %v1422
        %v1425 = vsel %vm1423, %v1424, %v1422
        %v1426 = vclz %v1425
        %v1427 = vsub.s32 %v1426, 2
        %vm1428 = vcmp.gt.s32.totalorder 0, %v1427
        %v1429 = vsel %vm1428, 0, %v1427
        %v1430 = vsub.s32 32, %v1429
        %v1431 = vshll.u32 %v1422, %v1429
        %v1432 = vshrl.u32 %v1414, %v1430
        %v1433 = vor.u32 %v1431, %v1432
        %v1434 = vsub.s32 4294967266, %v1429
        %v1435 = vadd.s32 %v1434, 127
        %v1436 = vshll.u32 %v1435, 23
        %v1437 = vor.u32 4788187, %v1436
        %v1438 = vand.u32 2147483647, %v1437
        %v1440 = vcvt.s32.f32 %v1433
        %v1441 = vmul.f32 %v1440, %v1438
        %v1442 = vxor.u32 %v1441, 2147483648
        %v1443 = vsel %vm1322, %v1442, %v1441
        %v1444 = vsub.s32 4, %v1420
        %v1445 = vsel %vm1322, %v1444, %v1420
        %v1446 = vsel %vm1321, %v1318, %v1443
        %v1447 = vsel %vm1321, 0, %v1445
        %v1448 = vmul.f32 %v1446, %v1446
        %v1449 = vmul.f32 %v1448, -0.001358992
        %v1450 = vadd.f32 %v1449, 0.041655596
        %v1451 = vmul.f32 %v1448, %v1450
        %v1452 = vadd.f32 %v1451, -0.4999988
        %v1453 = vmul.f32 %v1448, %v1452
        %v1454 = vadd.f32 1.0, %v1453
        %v1455 = vmul.f32 %v1446, %v1446
        %v1456 = vmul.f32 %v1455, -0.00019511016
        %v1457 = vadd.f32 %v1456, 0.008332121
        %v1458 = vmul.f32 %v1455, %v1457
        %v1459 = vadd.f32 %v1458, -0.16666654
        %v1460 = vmul.f32 %v1455, %v1459
        %v1461 = vadd.f32 %v1460, 1.0
        %v1462 = vmul.f32 %v1461, %v1446
        %vm1463 = vweird.f32 %v1318
        %v1464 = vand.u32 %v1447, 3
        %v1465 = vadd.s32 %v1447, 3
        %v1466 = vand.u32 %v1465, 3
        %vm1467 = vcmp.lt.s32.totalorder %v1464, 2
        %vm1468 = vcmp.eq.s32.totalorder %v1464, 0
        %v1469 = vxor.u32 %v1462, 2147483648
        %v1470 = vsel %vm1468, %v1454, %v1469
        %vm1471 = vcmp.eq.s32.totalorder %v1464, 2
        %v1472 = vxor.u32 %v1454, 2147483648
        %v1473 = vsel %vm1471, %v1472, %v1462
        %v1474 = vsel %vm1467, %v1470, %v1473
        %vm1475 = vcmp.lt.s32.totalorder %v1466, 2
        %vm1476 = vcmp.eq.s32.totalorder %v1466, 0
        %v1477 = vxor.u32 %v1462, 2147483648
        %v1478 = vsel %vm1476, %v1454, %v1477
        %vm1479 = vcmp.eq.s32.totalorder %v1466, 2
        %v1480 = vxor.u32 %v1454, 2147483648
        %v1481 = vsel %vm1479, %v1480, %v1462
        %v1482 = vsel %vm1475, %v1478, %v1481
        %v1483 = vrcp.pop %v1474
        %v1484 = vmul.f32 %v1474, %v1483
        %v1485 = vsub.f32 1.0, %v1484
        %v1486 = vmul.f32 %v1483, %v1485
        %v1487 = vadd.f32 %v1483, %v1486
        %vm1488 = vweird.f32 %v1474
        %vm1489 = vweird.f32 %v1483
        %vm1490 = vmor %vm1488, %vm1489
        %v1491 = vsel %vm1490, %v1483, %v1487
        %v1492 = vand.u32 2147483647, %v1474
        %vm1493 = vcmp.eq.f32.partialorder %v1492, 8.507059e+37
        %v1494 = vand.u32 %v1474, 2147483648
        %v1495 = vor.u32 1.1754944e-38, %v1494
        %v1496 = vsel %vm1493, %v1495, %v1491
        %v1497 = vmul.f32 %v1482, %v1496
        %v1498 = vsel %vm1463, nan, %v1497
        %v1499 = vand.u32 2147483647, %v1319
        %vm1500 = vcmp.le.f32.partialorder %v1499, 0.7853982
        %vm1501 = vcmp.lt.s32.totalorder %v1319, 0
        %v1502 = vand.u32 %v1319, 2139095040
        %v1503 = vshrl.u32 %v1502, 23
        %v1504 = vsub.s32 %v1503, 127
        %v1505 = vand.u32 2147483647, %v1319
        %v1506 = vand.u32 %v1505, 8388607
        %v1507 = vor.u32 %v1506, 8388608
        %v1508 = vsub.s32 0, %v1507
        %v1509 = vadd.s32 %v1504, 1
        %vm1510 = vcmp.gt.s32.totalorder %v1509, 0
        %v1511 = vsel %vm1510, %v1509, 0
        %v1512 = vshrl.u32 %v1511, 5
        %v1513 = vand.u32 %v1511, 31
        %v1514 = vsub.s32 32, %v1513
        %v1515 = vshrl.u32 683565275, %v1514
        %v1516 = vshll.u32 683565275, %v1513
        %v1517 = vshrl.u32 2475754826, %v1514
        %v1518 = vor.u32 %v1516, %v1517
        %v1519 = vshll.u32 2475754826, %v1513
        %v1520 = vshrl.u32 2131351028, %v1514
        %v1521 = vor.u32 %v1519, %v1520
        %v1522 = vshll.u32 2131351028, %v1513
        %v1523 = vshrl.u32 2102212464, %v1514
        %v1524 = vor.u32 %v1522, %v1523
        %v1525 = vshll.u32 2102212464, %v1513
        %v1526 = vshrl.u32 920167782, %v1514
        %v1527 = vor.u32 %v1525, %v1526
        %v1528 = vshll.u32 920167782, %v1513
        %v1529 = vshrl.u32 1326507024, %v1514
        %v1530 = vor.u32 %v1528, %v1529
        %vm1531 = vcmp.lt.s32.totalorder %v1512, 1
        %vm1532 = vcmp.lt.s32.totalorder %v1512, 2
        %vm1533 = vcmp.lt.s32.totalorder %v1512, 3
        %vm1534 = vcmp.lt.s32.totalorder %v1512, 4
        %v1535 = vsel %vm1531, %v1515, %v1518
        %v1536 = vsel %vm1534, %v1524, 2102212464
        %v1537 = vsel %vm1533, %v1521, %v1536
        %v1538 = vsel %vm1532, %v1535, %v1537
        %v1539 = vsel %vm1531, %v1518, %v1521
        %v1540 = vsel %vm1534, %v1527, 920167782
        %v1541 = vsel %vm1533, %v1524, %v1540
        %v1542 = vsel %vm1532, %v1539, %v1541
        %v1543 = vsel %vm1531, %v1521, %v1524
        %v1544 = vsel %vm1534, %v1530, 1326507024
        %v1545 = vsel %vm1533, %v1527, %v1544
        %v1546 = vsel %vm1532, %v1543, %v1545
        %v1547 = vshll.u32 %v1507, 8
        %v1548 = vand.u32 %v1547, 65535
        %v1549 = vshrl.u32 %v1547, 16
        %v1550 = vand.u32 %v1546, 65535
        %v1551 = vshrl.u32 %v1546, 16
        %v1552 = vmul.u32 %v1548, %v1550
        %v1553 = vmul.u32 %v1548, %v1551
        %v1554 = vmul.u32 %v1549, %v1550
        %v1555 = vmul.u32 %v1549, %v1551
        %v1556 = vshll.u32 %v1553, 16
        %v1557 = vshrl.u32 %v1553, 16
        %v1558 = vshll.u32 %v1554, 16
        %v1559 = vshrl.u32 %v1554, 16
        %vm1560 = vc.u32 %v1552, %v1556
        %v1561 = vsel %vm1560, 1, 0
        %v1562 = vadd.s32 %v1552, %v1556
        %v1563 = vadd.s32 %v1555, %v1561
        %vm1564 = vc.u32 %v1562, %v1558
        %v1565 = vsel %vm1564, 1, 0
        %v1566 = vadd.s32 %v1562, %v1558
        %v1567 = vadd.s32 %v1563, %v1565
        %v1568 = vadd.s32 %v1567, %v1557
        %v1569 = vadd.s32 %v1568, %v1559
        %v1570 = vand.u32 %v1547, 65535
        %v1571 = vshrl.u32 %v1547, 16
        %v1572 = vand.u32 %v1542, 65535
        %v1573 = vshrl.u32 %v1542, 16
        %v1574 = vmul.u32 %v1570, %v1572
        %v1575 = vmul.u32 %v1570, %v1573
        %v1576 = vmul.u32 %v1571, %v1572
        %v1577 = vmul.u32 %v1571, %v1573
        %v1578 = vshll.u32 %v1575, 16
        %v1579 = vshrl.u32 %v1575, 16
        %v1580 = vshll.u32 %v1576, 16
        %v1581 = vshrl.u32 %v1576, 16
        %vm1582 = vc.u32 %v1574, %v1578
        %v1583 = vsel %vm1582, 1, 0
        %v1584 = vadd.s32 %v1574, %v1578
        %v1585 = vadd.s32 %v1577, %v1583
        %vm1586 = vc.u32 %v1584, %v1580
        %v1587 = vsel %vm1586, 1, 0
        %v1588 = vadd.s32 %v1584, %v1580
        %v1589 = vadd.s32 %v1585, %v1587
        %v1590 = vadd.s32 %v1589, %v1579
        %v1591 = vadd.s32 %v1590, %v1581
        %v1592 = vmul.u32 %v1547, %v1538
        %v1593 = vadd.s32 %v1569, %v1588
        %vm1594 = vc.u32 %v1569, %v1588
        %v1595 = vadd.s32 %v1591, 1
        %v1596 = vsel %vm1594, %v1595, %v1591
        %v1597 = vadd.s32 %v1592, %v1596
        %v1598 = vadd.s32 %v1597, 536870912
        %v1599 = vshrl.u32 %v1598, 30
        %v1600 = vshll.u32 %v1599, 30
        %v1601 = vsub.s32 %v1597, %v1600
        %vm1602 = vcmp.lt.s32.totalorder %v1601, 0
        %v1603 = vsub.s32 0, %v1601
        %v1604 = vsel %vm1602, %v1603, %v1601
        %v1605 = vclz %v1604
        %v1606 = vsub.s32 %v1605, 2
        %vm1607 = vcmp.gt.s32.totalorder 0, %v1606
        %v1608 = vsel %vm1607, 0, %v1606
        %v1609 = vsub.s32 32, %v1608
        %v1610 = vshll.u32 %v1601, %v1608
        %v1611 = vshrl.u32 %v1593, %v1609
        %v1612 = vor.u32 %v1610, %v1611
        %v1613 = vsub.s32 4294967266, %v1608
        %v1614 = vadd.s32 %v1613, 127
        %v1615 = vshll.u32 %v1614, 23
        %v1616 = vor.u32 4788187, %v1615
        %v1617 = vand.u32 2147483647, %v1616
        %v1619 = vcvt.s32.f32 %v1612
        %v1620 = vmul.f32 %v1619, %v1617
        %v1621 = vxor.u32 %v1620, 2147483648
        %v1622 = vsel %vm1501, %v1621, %v1620
        %v1623 = vsub.s32 4, %v1599
        %v1624 = vsel %vm1501, %v1623, %v1599
        %v1625 = vsel %vm1500, %v1319, %v1622
        %v1626 = vsel %vm1500, 0, %v1624
        %v1627 = vmul.f32 %v1625, %v1625
        %v1628 = vmul.f32 %v1627, -0.001358992
        %v1629 = vadd.f32 %v1628, 0.041655596
        %v1630 = vmul.f32 %v1627, %v1629
        %v1631 = vadd.f32 %v1630, -0.4999988
        %v1632 = vmul.f32 %v1627, %v1631
        %v1633 = vadd.f32 1.0, %v1632
        %v1634 = vmul.f32 %v1625, %v1625
        %v1635 = vmul.f32 %v1634, -0.00019511016
        %v1636 = vadd.f32 %v1635, 0.008332121
        %v1637 = vmul.f32 %v1634, %v1636
        %v1638 = vadd.f32 %v1637, -0.16666654
        %v1639 = vmul.f32 %v1634, %v1638
        %v1640 = vadd.f32 %v1639, 1.0
        %v1641 = vmul.f32 %v1640, %v1625
        %vm1642 = vweird.f32 %v1319
        %v1643 = vand.u32 %v1626, 3
        %v1644 = vadd.s32 %v1626, 3
        %v1645 = vand.u32 %v1644, 3
        %vm1646 = vcmp.lt.s32.totalorder %v1643, 2
        %vm1647 = vcmp.eq.s32.totalorder %v1643, 0
        %v1648 = vxor.u32 %v1641, 2147483648
        %v1649 = vsel %vm1647, %v1633, %v1648
        %vm1650 = vcmp.eq.s32.totalorder %v1643, 2
        %v1651 = vxor.u32 %v1633, 2147483648
        %v1652 = vsel %vm1650, %v1651, %v1641
        %v1653 = vsel %vm1646, %v1649, %v1652
        %vm1654 = vcmp.lt.s32.totalorder %v1645, 2
        %vm1655 = vcmp.eq.s32.totalorder %v1645, 0
        %v1656 = vxor.u32 %v1641, 2147483648
        %v1657 = vsel %vm1655, %v1633, %v1656
        %vm1658 = vcmp.eq.s32.totalorder %v1645, 2
        %v1659 = vxor.u32 %v1633, 2147483648
        %v1660 = vsel %vm1658, %v1659, %v1641
        %v1661 = vsel %vm1654, %v1657, %v1660
        %v1662 = vrcp.pop %v1653
        %v1663 = vmul.f32 %v1653, %v1662
        %v1664 = vsub.f32 1.0, %v1663
        %v1665 = vmul.f32 %v1662, %v1664
        %v1666 = vadd.f32 %v1662, %v1665
        %vm1667 = vweird.f32 %v1653
        %vm1668 = vweird.f32 %v1662
        %vm1669 = vmor %vm1667, %vm1668
        %v1670 = vsel %vm1669, %v1662, %v1666
        %v1671 = vand.u32 2147483647, %v1653
        %vm1672 = vcmp.eq.f32.partialorder %v1671, 8.507059e+37
        %v1673 = vand.u32 %v1653, 2147483648
        %v1674 = vor.u32 1.1754944e-38, %v1673
        %v1675 = vsel %vm1672, %v1674, %v1670
        %v1676 = vmul.f32 %v1661, %v1675
        %v1677 = vsel %vm1642, nan, %v1676
        %1678 = vrot.lane.b32.xlu0 %v1498, 64
        %v1679 = vpop.permute.xlu0 %1678
        %1680 = vrot.lane.b32.xlu0 %v1677, 64
        %v1681 = vpop.permute.xlu0 %1680
        %v1682 = vmul.f32 %v1679, %v851
        %v1683 = vmul.f32 %v1681, %v1005
        %v1684 = vmul.f32 %v1679, %v1160
        %v1685 = vmul.f32 %v1681, %v1315
        %v1686 = vld [vmem:[#allocation11] sm:$0xff]
        %v1687 = vld [vmem:[#allocation11 + $0x8] sm:$0xff]
        %v1688 = vld [vmem:[#allocation11 + $0x10] sm:$0xff]
        %v1689 = vld [vmem:[#allocation11 + $0x18] sm:$0xff]
        %v1690 = vld [vmem:[#allocation11 + $0x20] sm:$0xff]
        %v1691 = vld [vmem:[#allocation11 + $0x28] sm:$0xff]
        %v1692 = vld [vmem:[#allocation11 + $0x30] sm:$0xff]
        %v1693 = vld [vmem:[#allocation11 + $0x38] sm:$0xff]
        %v1694 = vld [vmem:[#allocation11 + $0x40] sm:$0xff]
        %v1695 = vld [vmem:[#allocation11 + $0x48] sm:$0xff]
        %v1696 = vld [vmem:[#allocation11 + $0x50] sm:$0xff]
        %v1697 = vld [vmem:[#allocation11 + $0x58] sm:$0xff]
        %v1698 = vld [vmem:[#allocation11 + $0x60] sm:$0xff]
        %v1699 = vld [vmem:[#allocation11 + $0x68] sm:$0xff]
        %v1700 = vld [vmem:[#allocation11 + $0x70] sm:$0xff]
        %v1701 = vld [vmem:[#allocation11 + $0x78] sm:$0xff]
        %v1702 = vld [vmem:[#allocation11 + $0x80] sm:$0xff]
        %v1703 = vld [vmem:[#allocation11 + $0x88] sm:$0xff]
        %v1704 = vld [vmem:[#allocation11 + $0x90] sm:$0xff]
        %v1705 = vld [vmem:[#allocation11 + $0x98] sm:$0xff]
        %v1706 = vld [vmem:[#allocation11 + $0xa0] sm:$0xff]
        %v1707 = vld [vmem:[#allocation11 + $0xa8] sm:$0xff]
        %v1708 = vld [vmem:[#allocation11 + $0xb0] sm:$0xff]
        %v1709 = vld [vmem:[#allocation11 + $0xb8] sm:$0xff]
        %v1710 = vld [vmem:[#allocation11 + $0xc0] sm:$0xff]
        %v1711 = vld [vmem:[#allocation11 + $0xc8] sm:$0xff]
        %v1712 = vld [vmem:[#allocation11 + $0xd0] sm:$0xff]
        %v1713 = vld [vmem:[#allocation11 + $0xd8] sm:$0xff]
        %v1714 = vld [vmem:[#allocation11 + $0xe0] sm:$0xff]
        %v1715 = vld [vmem:[#allocation11 + $0xe8] sm:$0xff]
        %v1716 = vld [vmem:[#allocation11 + $0xf0] sm:$0xff]
        %v1717 = vld [vmem:[#allocation11 + $0xf8] sm:$0xff]
        %1718 = vmatpush.msra.mxu0 %v1701
        %1719 = vmatpush.msra.mxu0 %v1700
        %1720 = vmatpush.msra.mxu0 %v1699
        %1721 = vmatpush.msra.mxu0 %v1698
        %1722 = vmatpush.msra.mxu0 %v1697
        %1723 = vmatpush.msra.mxu0 %v1696
        %1724 = vmatpush.msra.mxu0 %v1695
        %1725 = vmatpush.msra.mxu0 %v1694
        %1726 = vmatpush.msra.mxu0 %v1693
        %1727 = vmatpush.msra.mxu0 %v1692
        %1728 = vmatpush.msra.mxu0 %v1691
        %1729 = vmatpush.msra.mxu0 %v1690
        %1730 = vmatpush.msra.mxu0 %v1689
        %1731 = vmatpush.msra.mxu0 %v1688
        %1732 = vmatpush.msra.mxu0 %v1687
        %1733 = vmatpush.msra.mxu0 %v1686
        %1734 = vmatmul.f32.gmra.mxu0 %v1682
        %v1735 = vpop.f32.mrf.mxu0
        %v1736 = vadd.f32 0.0, %v1735
        %1737 = vmatmul.f32.gmra.mxu0 %v1683
        %v1738 = vpop.f32.mrf.mxu0
        %v1739 = vadd.f32 0.0, %v1738
        %1740 = vdwg.mxu0
        %1741 = vmatpush.msra.mxu0 %v1717
        %1742 = vmatpush.msra.mxu0 %v1716
        %1743 = vmatpush.msra.mxu0 %v1715
        %1744 = vmatpush.msra.mxu0 %v1714
        %1745 = vmatpush.msra.mxu0 %v1713
        %1746 = vmatpush.msra.mxu0 %v1712
        %1747 = vmatpush.msra.mxu0 %v1711
        %1748 = vmatpush.msra.mxu0 %v1710
        %1749 = vmatpush.msra.mxu0 %v1709
        %1750 = vmatpush.msra.mxu0 %v1708
        %1751 = vmatpush.msra.mxu0 %v1707
        %1752 = vmatpush.msra.mxu0 %v1706
        %1753 = vmatpush.msra.mxu0 %v1705
        %1754 = vmatpush.msra.mxu0 %v1704
        %1755 = vmatpush.msra.mxu0 %v1703
        %1756 = vmatpush.msra.mxu0 %v1702
        %1757 = vmatmul.f32.gmra.mxu0 %v1684
        %v1758 = vpop.f32.mrf.mxu0
        %v1759 = vadd.f32 %v1736, %v1758
        %1760 = vmatmul.f32.gmra.mxu0 %v1685
        %v1761 = vpop.f32.mrf.mxu0
        %v1762 = vadd.f32 %v1739, %v1761
        %1763 = vdwg.mxu0
        %v1764 = vunpack.c.l.bf16 %v426
        %v1765 = vunpack.c.l.bf16 %v427
        %1767 = vset.pattern.permute.xlu0 10
        %1768 = vperm.xlu0 %1767, %v1764
        %v1769 = vpop.permute.xlu0 %1768
        %1772 = vset.pattern.permute.xlu0 10
        %1773 = vperm.xlu0 %1772, %v1765
        %v1774 = vpop.permute.xlu0 %1773
        %v1776 = vmul.f32 %v1769, %v1759
        %v1777 = vmul.f32 %v1774, %v1762
        %v1778 = vpack.c.bf16 %v1776, %v1776
        %v1779 = vpack.c.bf16 %v1777, %v1777
        %1780 = vst [vmem:[%s423] sm:$0xf] %v1778
        %1781 = vst [vmem:[%s423 + $0x4] sm:$0xf] %v1779
        %s1782 = sand.u32 %s228, 1
        %s1783 = scalar_lea.sflag [#allocation4], %s1782
        %s1784 = sand.u32 %s228, 1
        %s1785 = smul.addr %s1784, 8
        %s1786 = scalar_lea.vmem [#allocation13], %s1785
        // Predicated region
        $region77: #{tpu_custom_call.1} parent=51 // pred_check
          %p1787 = pneg %p238
        $region78: #{tpu_custom_call.1} parent=51 // pred_check_branch
          %1789 = sbr.rel (%p1787) target = $region80
        $region79: #{tpu_custom_call.1} parent=51 // pred_region
          %s1790 = smul.u32 2, %s32
          %1792 = vsyncadd %s1783, 0
          %s1793 = smul.addr %s33, 2
          %s1794 = sadd.s32 %s1790, %s1793
          %s1795 = smul.addr %s1794, 4
          %s1796 = scalar_lea.hbm %s8, %s1795
          %s1797 = sshll.u32 %s1786, 4
          %s1798 = int_to_ptr.vmem [resolvable:$true] %s1797
          %s1799 = sshll.u32 %s1796, 4
          %s1800 = int_to_ptr.hbm [resolvable:$true] %s1799
          %1805 = dma.vmem_to_hbm [thread:$0]  %s1798, 128, %s1800, %s1783, 64, 64, 4
        $region80: #{tpu_custom_call.1} parent=51 // pred_fallthru
          _
      $region52: #{tpu_custom_call.1} parent=5 // pred_fallthru
        _
      %p1806 = scmp.le.s32.totalorder 2, %s23
      // Predicated region
      $region81: #{tpu_custom_call.1} parent=5 // pred_check
        %p1807 = pneg %p1806
      $region82: #{tpu_custom_call.1} parent=5 // pred_check_branch
        %1809 = sbr.rel (%p1807) target = $region84
      $region83: #{tpu_custom_call.1} parent=5 // pred_region
        %s1810 = ssub.s32 %s23, 2
        // Predicated region
        $region85: #{tpu_custom_call.1} parent=83 // pred_check
          %p1811 = pneg %p244
        $region86: #{tpu_custom_call.1} parent=83 // pred_check_branch
          %1813 = sbr.rel (%p1811) target = $region88
        $region87: #{tpu_custom_call.1} parent=83 // pred_region
          %s1814 = sand.u32 %s229, 1
          %s1815 = scalar_lea.sflag [#allocation4], %s1814
          %s1816 = sand.u32 %s229, 1
          %s1817 = smul.addr %s1816, 8
          %s1818 = scalar_lea.vmem [#allocation13], %s1817
          %1820 = dma.done %s1815, 128
        $region88: #{tpu_custom_call.1} parent=83 // pred_fallthru
          _
      $region84: #{tpu_custom_call.1} parent=5 // pred_fallthru
        _
    $region6: #{tpu_custom_call.1} parent=1 // loop_footer
      %s27 = sadd.s32 1, %s23
    $region7: #{tpu_custom_call.1} parent=1 // loop_footer_branch
      %22 = sbr.rel target = $region3
    $region8: #{tpu_custom_call.1} parent=1 // loop_exit
      _
    %1821 = vsyncpa [#allocation3], 1
    %s1822 = scalar_lea.sflag [#allocation3], 1
    %1823 = vsyncpa %s1822, 1
    %1824 = vsyncpa [#allocation6], 1
    %s1825 = scalar_lea.sflag [#allocation6], 1
    %1826 = vsyncpa %s1825, 1
    %1827 = vsyncpa [#allocation9], 1
    %1828 = vsyncpa [#allocation12], 1
    %1829 = vsyncpa [#allocation4], 1
    %s1830 = scalar_lea.sflag [#allocation4], 1
    %1831 = vsyncpa %s1830, 1

</llo_original>
